<compile_context>
chip_gen: v5e
topology: v5e:2x2
jax: 0.10.0
libtpu: 0.0.40
codegen_flags: <defaults>
</compile_context>

<pallas_src>
import jax
import jax.numpy as jnp
from jax.experimental import pallas as pl
from jax.experimental.pallas import tpu as pltpu


def _down_kernel(x_ref, w1_ref, s1_ref, b1_ref, w2_ref, s2_ref, b2_ref,
                 o_ref, xp_ref, h1p_ref):
    # x_ref : (Ho, 2, Wo, 2*C_in)  pooling windows pre-grouped (free reshape)
    # w1_ref: (9, C_in, C_mid)     3x3 taps, tap = dh*3 + dw
    # s1/b1 : (1, C_mid)           folded BN1 scale / shift (f32)
    # w2_ref: (9, C_mid, C_out)
    # s2/b2 : (1, C_out)
    # o_ref : (Ho, Wo, C_out)
    # xp_ref : VMEM (Ho+2, Wo+2, C_in)   zero-padded pooled activation
    # h1p_ref: VMEM (Ho+2, Wo+2, C_mid)  zero-padded hidden activation (f32)
    Ho, Wo, C_out = o_ref.shape
    C_in = x_ref.shape[3] // 2
    C_mid = w1_ref.shape[2]

    # ---- 2x2 max-pool ----------------------------------------------------
    # vertical pair lives in dim 1; horizontal pair lives in the two lane
    # halves [0:C_in] / [C_in:2*C_in] of the last dim.
    vmax = jnp.maximum(x_ref[:, 0, :, :], x_ref[:, 1, :, :])      # (Ho, Wo, 2C)
    pooled = jnp.maximum(vmax[:, :, :C_in], vmax[:, :, C_in:])    # (Ho, Wo, C)

    # ---- conv1 (3x3, pad=1, no bias) + BN1 + ReLU --------------------------
    xp_ref[...] = jnp.zeros_like(xp_ref)            # zero halo
    xp_ref[1:Ho + 1, 1:Wo + 1, :] = pooled

    acc1 = jnp.zeros((Ho * Wo, C_mid), jnp.float32)
    for tap in range(9):                            # static unroll, 9 taps
        dh, dw = tap // 3, tap % 3
        xs = xp_ref[dh:dh + Ho, dw:dw + Wo, :].reshape(Ho * Wo, C_in)
        acc1 = acc1 + jnp.dot(xs, w1_ref[tap],
                              preferred_element_type=jnp.float32)
    h1 = jnp.maximum(acc1 * s1_ref[...] + b1_ref[...], 0.0)       # f32

    # ---- conv2 (3x3, pad=1, no bias) + BN2 + ReLU --------------------------
    h1p_ref[...] = jnp.zeros_like(h1p_ref)
    h1p_ref[1:Ho + 1, 1:Wo + 1, :] = h1.reshape(Ho, Wo, C_mid)

    acc2 = jnp.zeros((Ho * Wo, C_out), jnp.float32)
    for tap in range(9):
        dh, dw = tap // 3, tap % 3
        hs = h1p_ref[dh:dh + Ho, dw:dw + Wo, :].reshape(Ho * Wo, C_mid)
        acc2 = acc2 + jnp.dot(hs, w2_ref[tap],
                              preferred_element_type=jnp.float32)
    y = jnp.maximum(acc2 * s2_ref[...] + b2_ref[...], 0.0)

    o_ref[...] = y.reshape(Ho, Wo, C_out).astype(o_ref.dtype)


@jax.jit
def down_forward(x, w1, g1, beta1, m1, v1, w2, g2, beta2, m2, v2, eps=1e-5):
    """Forward pass of Down(in_channels, out_channels, with_bn=True).

    x : [N, C_in, H, W]           (NCHW, H and W even)
    w1: [C_mid, C_in, 3, 3]       first conv weight (no bias)
    w2: [C_out, C_mid, 3, 3]      second conv weight (no bias)
    g*, beta*, m*, v*: BatchNorm gamma / beta / running_mean / running_var.
    returns [N, C_out, H//2, W//2]
    """
    N, C_in, H, W = x.shape
    assert H % 2 == 0 and W % 2 == 0, "MaxPool2d(2) needs even H, W"
    Ho, Wo = H // 2, W // 2
    C_mid = w1.shape[0]
    C_out = w2.shape[0]

    # NCHW -> NHWC (one transpose), then a FREE reshape grouping each 2x2 pool
    # window: (N, H, W, C) -> (N, Ho, 2, Wo, 2*C); last dim = [w-even | w-odd].
    xr = jnp.transpose(x, (0, 2, 3, 1)).reshape(N, Ho, 2, Wo, 2 * C_in)

    # 3x3 taps as (tap, C_in, C_out) matrices; BN folded to scale/shift (tiny).
    w1t = jnp.transpose(w1, (2, 3, 1, 0)).reshape(9, C_in, C_mid)
    w2t = jnp.transpose(w2, (2, 3, 1, 0)).reshape(9, C_mid, C_out)
    inv1 = g1 / jnp.sqrt(v1 + eps)
    inv2 = g2 / jnp.sqrt(v2 + eps)
    s1 = inv1.reshape(1, C_mid).astype(jnp.float32)
    b1 = (beta1 - m1 * inv1).reshape(1, C_mid).astype(jnp.float32)
    s2 = inv2.reshape(1, C_out).astype(jnp.float32)
    b2 = (beta2 - m2 * inv2).reshape(1, C_out).astype(jnp.float32)

    y_nhwc = pl.pallas_call(
        _down_kernel,
        out_shape=jax.ShapeDtypeStruct((N, Ho, Wo, C_out), x.dtype),
        grid_spec=pltpu.PrefetchScalarGridSpec(
            num_scalar_prefetch=0,
            grid=(N,),
            in_specs=[
                pl.BlockSpec((None, Ho, 2, Wo, 2 * C_in),
                             lambda n: (n, 0, 0, 0, 0)),
                pl.BlockSpec((9, C_in, C_mid), lambda n: (0, 0, 0)),
                pl.BlockSpec((1, C_mid), lambda n: (0, 0)),
                pl.BlockSpec((1, C_mid), lambda n: (0, 0)),
                pl.BlockSpec((9, C_mid, C_out), lambda n: (0, 0, 0)),
                pl.BlockSpec((1, C_out), lambda n: (0, 0)),
                pl.BlockSpec((1, C_out), lambda n: (0, 0)),
            ],
            out_specs=pl.BlockSpec((None, Ho, Wo, C_out),
                                   lambda n: (n, 0, 0, 0)),
            scratch_shapes=[
                pltpu.VMEM((Ho + 2, Wo + 2, C_in), x.dtype),
                pltpu.VMEM((Ho + 2, Wo + 2, C_mid), jnp.float32),
            ],
        ),
        compiler_params=pltpu.CompilerParams(
            dimension_semantics=("parallel",),
        ),
    )(xr, w1t, s1, b1, w2t, s2, b2)

    # NHWC -> NCHW on the (4x smaller) output.
    return jnp.transpose(y_nhwc, (0, 3, 1, 2))


if __name__ == "__main__":
    key = jax.random.PRNGKey(0)
    ks = jax.random.split(key, 12)

    # Down(4, 8): mid_channels == out_channels == 8, with_bn=True.
    N, C_in, H, W = 2, 4, 16, 16
    C_out = 8
    C_mid = C_out

    x = jax.random.normal(ks[0], (N, C_in, H, W), jnp.float32)

    def conv_init(k, co, ci):
        bound = 1.0 / (ci * 9) ** 0.5
        return jax.random.uniform(k, (co, ci, 3, 3), jnp.float32, -bound, bound)

    w1 = conv_init(ks[1], C_mid, C_in)
    w2 = conv_init(ks[2], C_out, C_mid)
    # BatchNorm (inference) parameters, randomized so the folded scale/shift
    # path is actually exercised.
    g1 = jax.random.uniform(ks[3], (C_mid,), jnp.float32, 0.5, 1.5)
    beta1 = 0.1 * jax.random.normal(ks[4], (C_mid,), jnp.float32)
    m1 = 0.1 * jax.random.normal(ks[5], (C_mid,), jnp.float32)
    v1 = jax.random.uniform(ks[6], (C_mid,), jnp.float32, 0.5, 1.5)
    g2 = jax.random.uniform(ks[7], (C_out,), jnp.float32, 0.5, 1.5)
    beta2 = 0.1 * jax.random.normal(ks[8], (C_out,), jnp.float32)
    m2 = 0.1 * jax.random.normal(ks[9], (C_out,), jnp.float32)
    v2 = jax.random.uniform(ks[10], (C_out,), jnp.float32, 0.5, 1.5)

    y = down_forward(x, w1, g1, beta1, m1, v1, w2, g2, beta2, m2, v2)
    y = jax.block_until_ready(y)

    # Pure-JAX reference: maxpool 2x2 -> (conv3x3 SAME -> folded BN -> ReLU) x2
    def ref_down(x):
        p = jnp.max(x.reshape(N, C_in, H // 2, 2, W // 2, 2), axis=(3, 5))

        def block(h, w, g, b, m, v):
            yy = jax.lax.conv_general_dilated(
                h, w, window_strides=(1, 1), padding="SAME",
                dimension_numbers=("NCHW", "OIHW", "NCHW"),
                precision=jax.lax.Precision.HIGHEST)
            s = g / jnp.sqrt(v + 1e-5)
            yy = yy * s[None, :, None, None] + (b - m * s)[None, :, None, None]
            return jnp.maximum(yy, 0.0)

        hmid = block(p, w1, g1, beta1, m1, v1)
        return block(hmid, w2, g2, beta2, m2, v2)

    y_ref = ref_down(x)
    assert y.shape == (N, C_out, H // 2, W // 2), y.shape
    max_err = float(jnp.max(jnp.abs(y - y_ref)))
    assert jnp.allclose(y, y_ref, atol=1e-4, rtol=1e-4), max_err

    print("KERNEL_OK")
</pallas_src>

<mosaic_0001>
module attributes {stable_mosaic.version = 11 : i64} {
  func.func @_down_kernel(%arg0: i32, %arg1: memref<1x8x2x8x8xf32, #tpu.memory_space<vmem>>, %arg2: memref<9x4x8xf32, #tpu.memory_space<vmem>>, %arg3: memref<1x8xf32, #tpu.memory_space<vmem>>, %arg4: memref<1x8xf32, #tpu.memory_space<vmem>>, %arg5: memref<9x8x8xf32, #tpu.memory_space<vmem>>, %arg6: memref<1x8xf32, #tpu.memory_space<vmem>>, %arg7: memref<1x8xf32, #tpu.memory_space<vmem>>, %arg8: memref<1x8x8x8xf32, #tpu.memory_space<vmem>>, %arg9: memref<10x10x4xf32, #tpu.memory_space<vmem>>, %arg10: memref<10x10x8xf32, #tpu.memory_space<vmem>>) attributes {dimension_semantics = [#tpu.dimension_semantics<parallel>], iteration_bounds = array<i64: 2>, scalar_prefetch = 0 : i64, scratch_operands = 2 : i64, tpu.core_type = #tpu.core_type<tc>, window_params = [{transform_indices = @transform_0, window_bounds = array<i64: 1, 8, 2, 8, 8>}, {pipeline_mode = #tpu.pipeline_mode<synchronous>, transform_indices = @transform_1, window_bounds = array<i64: 9, 4, 8>}, {pipeline_mode = #tpu.pipeline_mode<synchronous>, transform_indices = @transform_2, window_bounds = array<i64: 1, 8>}, {pipeline_mode = #tpu.pipeline_mode<synchronous>, transform_indices = @transform_3, window_bounds = array<i64: 1, 8>}, {pipeline_mode = #tpu.pipeline_mode<synchronous>, transform_indices = @transform_4, window_bounds = array<i64: 9, 8, 8>}, {pipeline_mode = #tpu.pipeline_mode<synchronous>, transform_indices = @transform_5, window_bounds = array<i64: 1, 8>}, {pipeline_mode = #tpu.pipeline_mode<synchronous>, transform_indices = @transform_6, window_bounds = array<i64: 1, 8>}, {transform_indices = @transform_7, window_bounds = array<i64: 1, 8, 8, 8>}]} {
    %c0 = arith.constant 0 : index
    %c0_0 = arith.constant 0 : index
    %c0_1 = arith.constant 0 : index
    %c0_2 = arith.constant 0 : index
    %c0_3 = arith.constant 0 : index
    %0 = vector.load %arg1[%c0, %c0_0, %c0_1, %c0_2, %c0_3] : memref<1x8x2x8x8xf32, #tpu.memory_space<vmem>>, vector<1x8x1x8x8xf32>
    %1 = vector.shape_cast %0 : vector<1x8x1x8x8xf32> to vector<8x8x8xf32>
    %c0_4 = arith.constant 0 : index
    %c0_5 = arith.constant 0 : index
    %c1 = arith.constant 1 : index
    %c0_6 = arith.constant 0 : index
    %c0_7 = arith.constant 0 : index
    %2 = vector.load %arg1[%c0_4, %c0_5, %c1, %c0_6, %c0_7] : memref<1x8x2x8x8xf32, #tpu.memory_space<vmem>>, vector<1x8x1x8x8xf32>
    %3 = vector.shape_cast %2 : vector<1x8x1x8x8xf32> to vector<8x8x8xf32>
    %4 = arith.maximumf %1, %3 : vector<8x8x8xf32>
    %5 = vector.extract_strided_slice %4 {offsets = [0, 0, 0], sizes = [8, 8, 4], strides = [1, 1, 1]} : vector<8x8x8xf32> to vector<8x8x4xf32>
    %6 = vector.extract_strided_slice %4 {offsets = [0, 0, 4], sizes = [8, 8, 4], strides = [1, 1, 1]} : vector<8x8x8xf32> to vector<8x8x4xf32>
    %7 = arith.maximumf %5, %6 : vector<8x8x4xf32>
    %cst = arith.constant 0.000000e+00 : f32
    %8 = vector.broadcast %cst : f32 to vector<10x10x4xf32>
    %c0_8 = arith.constant 0 : index
    %c0_9 = arith.constant 0 : index
    %c0_10 = arith.constant 0 : index
    %9 = vector.load %arg9[%c0_8, %c0_9, %c0_10] : memref<10x10x4xf32, #tpu.memory_space<vmem>>, vector<10x10x4xf32>
    tpu.vector_store %arg9[%c0_8, %c0_9, %c0_10], %8 {strides = array<i32>} : memref<10x10x4xf32, #tpu.memory_space<vmem>>, vector<10x10x4xf32>,
    %c1_11 = arith.constant 1 : index
    %c1_12 = arith.constant 1 : index
    %c0_13 = arith.constant 0 : index
    %10 = vector.load %arg9[%c1_11, %c1_12, %c0_13] : memref<10x10x4xf32, #tpu.memory_space<vmem>>, vector<8x8x4xf32>
    tpu.vector_store %arg9[%c1_11, %c1_12, %c0_13], %7 {strides = array<i32>} : memref<10x10x4xf32, #tpu.memory_space<vmem>>, vector<8x8x4xf32>,
    %cst_14 = arith.constant 0.000000e+00 : f32
    %11 = vector.broadcast %cst_14 : f32 to vector<64x8xf32>
    %c0_15 = arith.constant 0 : index
    %c0_16 = arith.constant 0 : index
    %c0_17 = arith.constant 0 : index
    %12 = vector.load %arg9[%c0_15, %c0_16, %c0_17] : memref<10x10x4xf32, #tpu.memory_space<vmem>>, vector<8x8x4xf32>
    %13 = vector.shape_cast %12 : vector<8x8x4xf32> to vector<64x4xf32>
    %c0_18 = arith.constant 0 : index
    %c0_19 = arith.constant 0 : index
    %c0_20 = arith.constant 0 : index
    %14 = vector.load %arg2[%c0_18, %c0_19, %c0_20] : memref<9x4x8xf32, #tpu.memory_space<vmem>>, vector<1x4x8xf32>
    %15 = vector.shape_cast %14 : vector<1x4x8xf32> to vector<4x8xf32>
    %cst_21 = arith.constant dense<0.000000e+00> : vector<64x8xf32>
    %16 = tpu.matmul %13, %15, %cst_21 {dimension_numbers = #tpu.dot_dimension_numbers<[1], [0], [0], [1], [0, 0, 1, 1], [], []>} : vector<64x4xf32>, vector<4x8xf32>, vector<64x8xf32> -> vector<64x8xf32>
    %17 = arith.addf %11, %16 : vector<64x8xf32>
    %c0_22 = arith.constant 0 : index
    %c1_23 = arith.constant 1 : index
    %c0_24 = arith.constant 0 : index
    %18 = vector.load %arg9[%c0_22, %c1_23, %c0_24] : memref<10x10x4xf32, #tpu.memory_space<vmem>>, vector<8x8x4xf32>
    %19 = vector.shape_cast %18 : vector<8x8x4xf32> to vector<64x4xf32>
    %c1_25 = arith.constant 1 : index
    %c0_26 = arith.constant 0 : index
    %c0_27 = arith.constant 0 : index
    %20 = vector.load %arg2[%c1_25, %c0_26, %c0_27] : memref<9x4x8xf32, #tpu.memory_space<vmem>>, vector<1x4x8xf32>
    %21 = vector.shape_cast %20 : vector<1x4x8xf32> to vector<4x8xf32>
    %cst_28 = arith.constant dense<0.000000e+00> : vector<64x8xf32>
    %22 = tpu.matmul %19, %21, %cst_28 {dimension_numbers = #tpu.dot_dimension_numbers<[1], [0], [0], [1], [0, 0, 1, 1], [], []>} : vector<64x4xf32>, vector<4x8xf32>, vector<64x8xf32> -> vector<64x8xf32>
    %23 = arith.addf %17, %22 : vector<64x8xf32>
    %c0_29 = arith.constant 0 : index
    %c2 = arith.constant 2 : index
    %c0_30 = arith.constant 0 : index
    %24 = vector.load %arg9[%c0_29, %c2, %c0_30] : memref<10x10x4xf32, #tpu.memory_space<vmem>>, vector<8x8x4xf32>
    %25 = vector.shape_cast %24 : vector<8x8x4xf32> to vector<64x4xf32>
    %c2_31 = arith.constant 2 : index
    %c0_32 = arith.constant 0 : index
    %c0_33 = arith.constant 0 : index
    %26 = vector.load %arg2[%c2_31, %c0_32, %c0_33] : memref<9x4x8xf32, #tpu.memory_space<vmem>>, vector<1x4x8xf32>
    %27 = vector.shape_cast %26 : vector<1x4x8xf32> to vector<4x8xf32>
    %cst_34 = arith.constant dense<0.000000e+00> : vector<64x8xf32>
    %28 = tpu.matmul %25, %27, %cst_34 {dimension_numbers = #tpu.dot_dimension_numbers<[1], [0], [0], [1], [0, 0, 1, 1], [], []>} : vector<64x4xf32>, vector<4x8xf32>, vector<64x8xf32> -> vector<64x8xf32>
    %29 = arith.addf %23, %28 : vector<64x8xf32>
    %c1_35 = arith.constant 1 : index
    %c0_36 = arith.constant 0 : index
    %c0_37 = arith.constant 0 : index
    %30 = vector.load %arg9[%c1_35, %c0_36, %c0_37] : memref<10x10x4xf32, #tpu.memory_space<vmem>>, vector<8x8x4xf32>
    %31 = vector.shape_cast %30 : vector<8x8x4xf32> to vector<64x4xf32>
    %c3 = arith.constant 3 : index
    %c0_38 = arith.constant 0 : index
    %c0_39 = arith.constant 0 : index
    %32 = vector.load %arg2[%c3, %c0_38, %c0_39] : memref<9x4x8xf32, #tpu.memory_space<vmem>>, vector<1x4x8xf32>
    %33 = vector.shape_cast %32 : vector<1x4x8xf32> to vector<4x8xf32>
    %cst_40 = arith.constant dense<0.000000e+00> : vector<64x8xf32>
    %34 = tpu.matmul %31, %33, %cst_40 {dimension_numbers = #tpu.dot_dimension_numbers<[1], [0], [0], [1], [0, 0, 1, 1], [], []>} : vector<64x4xf32>, vector<4x8xf32>, vector<64x8xf32> -> vector<64x8xf32>
    %35 = arith.addf %29, %34 : vector<64x8xf32>
    %c1_41 = arith.constant 1 : index
    %c1_42 = arith.constant 1 : index
    %c0_43 = arith.constant 0 : index
    %36 = vector.load %arg9[%c1_41, %c1_42, %c0_43] : memref<10x10x4xf32, #tpu.memory_space<vmem>>, vector<8x8x4xf32>
    %37 = vector.shape_cast %36 : vector<8x8x4xf32> to vector<64x4xf32>
    %c4 = arith.constant 4 : index
    %c0_44 = arith.constant 0 : index
    %c0_45 = arith.constant 0 : index
    %38 = vector.load %arg2[%c4, %c0_44, %c0_45] : memref<9x4x8xf32, #tpu.memory_space<vmem>>, vector<1x4x8xf32>
    %39 = vector.shape_cast %38 : vector<1x4x8xf32> to vector<4x8xf32>
    %cst_46 = arith.constant dense<0.000000e+00> : vector<64x8xf32>
    %40 = tpu.matmul %37, %39, %cst_46 {dimension_numbers = #tpu.dot_dimension_numbers<[1], [0], [0], [1], [0, 0, 1, 1], [], []>} : vector<64x4xf32>, vector<4x8xf32>, vector<64x8xf32> -> vector<64x8xf32>
    %41 = arith.addf %35, %40 : vector<64x8xf32>
    %c1_47 = arith.constant 1 : index
    %c2_48 = arith.constant 2 : index
    %c0_49 = arith.constant 0 : index
    %42 = vector.load %arg9[%c1_47, %c2_48, %c0_49] : memref<10x10x4xf32, #tpu.memory_space<vmem>>, vector<8x8x4xf32>
    %43 = vector.shape_cast %42 : vector<8x8x4xf32> to vector<64x4xf32>
    %c5 = arith.constant 5 : index
    %c0_50 = arith.constant 0 : index
    %c0_51 = arith.constant 0 : index
    %44 = vector.load %arg2[%c5, %c0_50, %c0_51] : memref<9x4x8xf32, #tpu.memory_space<vmem>>, vector<1x4x8xf32>
    %45 = vector.shape_cast %44 : vector<1x4x8xf32> to vector<4x8xf32>
    %cst_52 = arith.constant dense<0.000000e+00> : vector<64x8xf32>
    %46 = tpu.matmul %43, %45, %cst_52 {dimension_numbers = #tpu.dot_dimension_numbers<[1], [0], [0], [1], [0, 0, 1, 1], [], []>} : vector<64x4xf32>, vector<4x8xf32>, vector<64x8xf32> -> vector<64x8xf32>
    %47 = arith.addf %41, %46 : vector<64x8xf32>
    %c2_53 = arith.constant 2 : index
    %c0_54 = arith.constant 0 : index
    %c0_55 = arith.constant 0 : index
    %48 = vector.load %arg9[%c2_53, %c0_54, %c0_55] : memref<10x10x4xf32, #tpu.memory_space<vmem>>, vector<8x8x4xf32>
    %49 = vector.shape_cast %48 : vector<8x8x4xf32> to vector<64x4xf32>
    %c6 = arith.constant 6 : index
    %c0_56 = arith.constant 0 : index
    %c0_57 = arith.constant 0 : index
    %50 = vector.load %arg2[%c6, %c0_56, %c0_57] : memref<9x4x8xf32, #tpu.memory_space<vmem>>, vector<1x4x8xf32>
    %51 = vector.shape_cast %50 : vector<1x4x8xf32> to vector<4x8xf32>
    %cst_58 = arith.constant dense<0.000000e+00> : vector<64x8xf32>
    %52 = tpu.matmul %49, %51, %cst_58 {dimension_numbers = #tpu.dot_dimension_numbers<[1], [0], [0], [1], [0, 0, 1, 1], [], []>} : vector<64x4xf32>, vector<4x8xf32>, vector<64x8xf32> -> vector<64x8xf32>
    %53 = arith.addf %47, %52 : vector<64x8xf32>
    %c2_59 = arith.constant 2 : index
    %c1_60 = arith.constant 1 : index
    %c0_61 = arith.constant 0 : index
    %54 = vector.load %arg9[%c2_59, %c1_60, %c0_61] : memref<10x10x4xf32, #tpu.memory_space<vmem>>, vector<8x8x4xf32>
    %55 = vector.shape_cast %54 : vector<8x8x4xf32> to vector<64x4xf32>
    %c7 = arith.constant 7 : index
    %c0_62 = arith.constant 0 : index
    %c0_63 = arith.constant 0 : index
    %56 = vector.load %arg2[%c7, %c0_62, %c0_63] : memref<9x4x8xf32, #tpu.memory_space<vmem>>, vector<1x4x8xf32>
    %57 = vector.shape_cast %56 : vector<1x4x8xf32> to vector<4x8xf32>
    %cst_64 = arith.constant dense<0.000000e+00> : vector<64x8xf32>
    %58 = tpu.matmul %55, %57, %cst_64 {dimension_numbers = #tpu.dot_dimension_numbers<[1], [0], [0], [1], [0, 0, 1, 1], [], []>} : vector<64x4xf32>, vector<4x8xf32>, vector<64x8xf32> -> vector<64x8xf32>
    %59 = arith.addf %53, %58 : vector<64x8xf32>
    %c2_65 = arith.constant 2 : index
    %c2_66 = arith.constant 2 : index
    %c0_67 = arith.constant 0 : index
    %60 = vector.load %arg9[%c2_65, %c2_66, %c0_67] : memref<10x10x4xf32, #tpu.memory_space<vmem>>, vector<8x8x4xf32>
    %61 = vector.shape_cast %60 : vector<8x8x4xf32> to vector<64x4xf32>
    %c8 = arith.constant 8 : index
    %c0_68 = arith.constant 0 : index
    %c0_69 = arith.constant 0 : index
    %62 = vector.load %arg2[%c8, %c0_68, %c0_69] : memref<9x4x8xf32, #tpu.memory_space<vmem>>, vector<1x4x8xf32>
    %63 = vector.shape_cast %62 : vector<1x4x8xf32> to vector<4x8xf32>
    %cst_70 = arith.constant dense<0.000000e+00> : vector<64x8xf32>
    %64 = tpu.matmul %61, %63, %cst_70 {dimension_numbers = #tpu.dot_dimension_numbers<[1], [0], [0], [1], [0, 0, 1, 1], [], []>} : vector<64x4xf32>, vector<4x8xf32>, vector<64x8xf32> -> vector<64x8xf32>
    %65 = arith.addf %59, %64 : vector<64x8xf32>
    %c0_71 = arith.constant 0 : index
    %c0_72 = arith.constant 0 : index
    %66 = vector.load %arg3[%c0_71, %c0_72] : memref<1x8xf32, #tpu.memory_space<vmem>>, vector<1x8xf32>
    %67 = vector.broadcast %66 : vector<1x8xf32> to vector<64x8xf32>
    %68 = arith.mulf %65, %67 : vector<64x8xf32>
    %c0_73 = arith.constant 0 : index
    %c0_74 = arith.constant 0 : index
    %69 = vector.load %arg4[%c0_73, %c0_74] : memref<1x8xf32, #tpu.memory_space<vmem>>, vector<1x8xf32>
    %70 = vector.broadcast %69 : vector<1x8xf32> to vector<64x8xf32>
    %71 = arith.addf %68, %70 : vector<64x8xf32>
    %cst_75 = arith.constant 0.000000e+00 : f32
    %72 = vector.broadcast %cst_75 : f32 to vector<64x8xf32>
    %73 = arith.maximumf %71, %72 : vector<64x8xf32>
    %cst_76 = arith.constant 0.000000e+00 : f32
    %74 = vector.broadcast %cst_76 : f32 to vector<10x10x8xf32>
    %c0_77 = arith.constant 0 : index
    %c0_78 = arith.constant 0 : index
    %c0_79 = arith.constant 0 : index
    %75 = vector.load %arg10[%c0_77, %c0_78, %c0_79] : memref<10x10x8xf32, #tpu.memory_space<vmem>>, vector<10x10x8xf32>
    tpu.vector_store %arg10[%c0_77, %c0_78, %c0_79], %74 {strides = array<i32>} : memref<10x10x8xf32, #tpu.memory_space<vmem>>, vector<10x10x8xf32>,
    %76 = vector.shape_cast %73 : vector<64x8xf32> to vector<8x8x8xf32>
    %c1_80 = arith.constant 1 : index
    %c1_81 = arith.constant 1 : index
    %c0_82 = arith.constant 0 : index
    %77 = vector.load %arg10[%c1_80, %c1_81, %c0_82] : memref<10x10x8xf32, #tpu.memory_space<vmem>>, vector<8x8x8xf32>
    tpu.vector_store %arg10[%c1_80, %c1_81, %c0_82], %76 {strides = array<i32>} : memref<10x10x8xf32, #tpu.memory_space<vmem>>, vector<8x8x8xf32>,
    %cst_83 = arith.constant 0.000000e+00 : f32
    %78 = vector.broadcast %cst_83 : f32 to vector<64x8xf32>
    %c0_84 = arith.constant 0 : index
    %c0_85 = arith.constant 0 : index
    %c0_86 = arith.constant 0 : index
    %79 = vector.load %arg10[%c0_84, %c0_85, %c0_86] : memref<10x10x8xf32, #tpu.memory_space<vmem>>, vector<8x8x8xf32>
    %80 = vector.shape_cast %79 : vector<8x8x8xf32> to vector<64x8xf32>
    %c0_87 = arith.constant 0 : index
    %c0_88 = arith.constant 0 : index
    %c0_89 = arith.constant 0 : index
    %81 = vector.load %arg5[%c0_87, %c0_88, %c0_89] : memref<9x8x8xf32, #tpu.memory_space<vmem>>, vector<1x8x8xf32>
    %82 = vector.shape_cast %81 : vector<1x8x8xf32> to vector<8x8xf32>
    %cst_90 = arith.constant dense<0.000000e+00> : vector<64x8xf32>
    %83 = tpu.matmul %80, %82, %cst_90 {dimension_numbers = #tpu.dot_dimension_numbers<[1], [0], [0], [1], [0, 0, 1, 1], [], []>} : vector<64x8xf32>, vector<8x8xf32>, vector<64x8xf32> -> vector<64x8xf32>
    %84 = arith.addf %78, %83 : vector<64x8xf32>
    %c0_91 = arith.constant 0 : index
    %c1_92 = arith.constant 1 : index
    %c0_93 = arith.constant 0 : index
    %85 = vector.load %arg10[%c0_91, %c1_92, %c0_93] : memref<10x10x8xf32, #tpu.memory_space<vmem>>, vector<8x8x8xf32>
    %86 = vector.shape_cast %85 : vector<8x8x8xf32> to vector<64x8xf32>
    %c1_94 = arith.constant 1 : index
    %c0_95 = arith.constant 0 : index
    %c0_96 = arith.constant 0 : index
    %87 = vector.load %arg5[%c1_94, %c0_95, %c0_96] : memref<9x8x8xf32, #tpu.memory_space<vmem>>, vector<1x8x8xf32>
    %88 = vector.shape_cast %87 : vector<1x8x8xf32> to vector<8x8xf32>
    %cst_97 = arith.constant dense<0.000000e+00> : vector<64x8xf32>
    %89 = tpu.matmul %86, %88, %cst_97 {dimension_numbers = #tpu.dot_dimension_numbers<[1], [0], [0], [1], [0, 0, 1, 1], [], []>} : vector<64x8xf32>, vector<8x8xf32>, vector<64x8xf32> -> vector<64x8xf32>
    %90 = arith.addf %84, %89 : vector<64x8xf32>
    %c0_98 = arith.constant 0 : index
    %c2_99 = arith.constant 2 : index
    %c0_100 = arith.constant 0 : index
    %91 = vector.load %arg10[%c0_98, %c2_99, %c0_100] : memref<10x10x8xf32, #tpu.memory_space<vmem>>, vector<8x8x8xf32>
    %92 = vector.shape_cast %91 : vector<8x8x8xf32> to vector<64x8xf32>
    %c2_101 = arith.constant 2 : index
    %c0_102 = arith.constant 0 : index
    %c0_103 = arith.constant 0 : index
    %93 = vector.load %arg5[%c2_101, %c0_102, %c0_103] : memref<9x8x8xf32, #tpu.memory_space<vmem>>, vector<1x8x8xf32>
    %94 = vector.shape_cast %93 : vector<1x8x8xf32> to vector<8x8xf32>
    %cst_104 = arith.constant dense<0.000000e+00> : vector<64x8xf32>
    %95 = tpu.matmul %92, %94, %cst_104 {dimension_numbers = #tpu.dot_dimension_numbers<[1], [0], [0], [1], [0, 0, 1, 1], [], []>} : vector<64x8xf32>, vector<8x8xf32>, vector<64x8xf32> -> vector<64x8xf32>
    %96 = arith.addf %90, %95 : vector<64x8xf32>
    %c1_105 = arith.constant 1 : index
    %c0_106 = arith.constant 0 : index
    %c0_107 = arith.constant 0 : index
    %97 = vector.load %arg10[%c1_105, %c0_106, %c0_107] : memref<10x10x8xf32, #tpu.memory_space<vmem>>, vector<8x8x8xf32>
    %98 = vector.shape_cast %97 : vector<8x8x8xf32> to vector<64x8xf32>
    %c3_108 = arith.constant 3 : index
    %c0_109 = arith.constant 0 : index
    %c0_110 = arith.constant 0 : index
    %99 = vector.load %arg5[%c3_108, %c0_109, %c0_110] : memref<9x8x8xf32, #tpu.memory_space<vmem>>, vector<1x8x8xf32>
    %100 = vector.shape_cast %99 : vector<1x8x8xf32> to vector<8x8xf32>
    %cst_111 = arith.constant dense<0.000000e+00> : vector<64x8xf32>
    %101 = tpu.matmul %98, %100, %cst_111 {dimension_numbers = #tpu.dot_dimension_numbers<[1], [0], [0], [1], [0, 0, 1, 1], [], []>} : vector<64x8xf32>, vector<8x8xf32>, vector<64x8xf32> -> vector<64x8xf32>
    %102 = arith.addf %96, %101 : vector<64x8xf32>
    %c1_112 = arith.constant 1 : index
    %c1_113 = arith.constant 1 : index
    %c0_114 = arith.constant 0 : index
    %103 = vector.load %arg10[%c1_112, %c1_113, %c0_114] : memref<10x10x8xf32, #tpu.memory_space<vmem>>, vector<8x8x8xf32>
    %104 = vector.shape_cast %103 : vector<8x8x8xf32> to vector<64x8xf32>
    %c4_115 = arith.constant 4 : index
    %c0_116 = arith.constant 0 : index
    %c0_117 = arith.constant 0 : index
    %105 = vector.load %arg5[%c4_115, %c0_116, %c0_117] : memref<9x8x8xf32, #tpu.memory_space<vmem>>, vector<1x8x8xf32>
    %106 = vector.shape_cast %105 : vector<1x8x8xf32> to vector<8x8xf32>
    %cst_118 = arith.constant dense<0.000000e+00> : vector<64x8xf32>
    %107 = tpu.matmul %104, %106, %cst_118 {dimension_numbers = #tpu.dot_dimension_numbers<[1], [0], [0], [1], [0, 0, 1, 1], [], []>} : vector<64x8xf32>, vector<8x8xf32>, vector<64x8xf32> -> vector<64x8xf32>
    %108 = arith.addf %102, %107 : vector<64x8xf32>
    %c1_119 = arith.constant 1 : index
    %c2_120 = arith.constant 2 : index
    %c0_121 = arith.constant 0 : index
    %109 = vector.load %arg10[%c1_119, %c2_120, %c0_121] : memref<10x10x8xf32, #tpu.memory_space<vmem>>, vector<8x8x8xf32>
    %110 = vector.shape_cast %109 : vector<8x8x8xf32> to vector<64x8xf32>
    %c5_122 = arith.constant 5 : index
    %c0_123 = arith.constant 0 : index
    %c0_124 = arith.constant 0 : index
    %111 = vector.load %arg5[%c5_122, %c0_123, %c0_124] : memref<9x8x8xf32, #tpu.memory_space<vmem>>, vector<1x8x8xf32>
    %112 = vector.shape_cast %111 : vector<1x8x8xf32> to vector<8x8xf32>
    %cst_125 = arith.constant dense<0.000000e+00> : vector<64x8xf32>
    %113 = tpu.matmul %110, %112, %cst_125 {dimension_numbers = #tpu.dot_dimension_numbers<[1], [0], [0], [1], [0, 0, 1, 1], [], []>} : vector<64x8xf32>, vector<8x8xf32>, vector<64x8xf32> -> vector<64x8xf32>
    %114 = arith.addf %108, %113 : vector<64x8xf32>
    %c2_126 = arith.constant 2 : index
    %c0_127 = arith.constant 0 : index
    %c0_128 = arith.constant 0 : index
    %115 = vector.load %arg10[%c2_126, %c0_127, %c0_128] : memref<10x10x8xf32, #tpu.memory_space<vmem>>, vector<8x8x8xf32>
    %116 = vector.shape_cast %115 : vector<8x8x8xf32> to vector<64x8xf32>
    %c6_129 = arith.constant 6 : index
    %c0_130 = arith.constant 0 : index
    %c0_131 = arith.constant 0 : index
    %117 = vector.load %arg5[%c6_129, %c0_130, %c0_131] : memref<9x8x8xf32, #tpu.memory_space<vmem>>, vector<1x8x8xf32>
    %118 = vector.shape_cast %117 : vector<1x8x8xf32> to vector<8x8xf32>
    %cst_132 = arith.constant dense<0.000000e+00> : vector<64x8xf32>
    %119 = tpu.matmul %116, %118, %cst_132 {dimension_numbers = #tpu.dot_dimension_numbers<[1], [0], [0], [1], [0, 0, 1, 1], [], []>} : vector<64x8xf32>, vector<8x8xf32>, vector<64x8xf32> -> vector<64x8xf32>
    %120 = arith.addf %114, %119 : vector<64x8xf32>
    %c2_133 = arith.constant 2 : index
    %c1_134 = arith.constant 1 : index
    %c0_135 = arith.constant 0 : index
    %121 = vector.load %arg10[%c2_133, %c1_134, %c0_135] : memref<10x10x8xf32, #tpu.memory_space<vmem>>, vector<8x8x8xf32>
    %122 = vector.shape_cast %121 : vector<8x8x8xf32> to vector<64x8xf32>
    %c7_136 = arith.constant 7 : index
    %c0_137 = arith.constant 0 : index
    %c0_138 = arith.constant 0 : index
    %123 = vector.load %arg5[%c7_136, %c0_137, %c0_138] : memref<9x8x8xf32, #tpu.memory_space<vmem>>, vector<1x8x8xf32>
    %124 = vector.shape_cast %123 : vector<1x8x8xf32> to vector<8x8xf32>
    %cst_139 = arith.constant dense<0.000000e+00> : vector<64x8xf32>
    %125 = tpu.matmul %122, %124, %cst_139 {dimension_numbers = #tpu.dot_dimension_numbers<[1], [0], [0], [1], [0, 0, 1, 1], [], []>} : vector<64x8xf32>, vector<8x8xf32>, vector<64x8xf32> -> vector<64x8xf32>
    %126 = arith.addf %120, %125 : vector<64x8xf32>
    %c2_140 = arith.constant 2 : index
    %c2_141 = arith.constant 2 : index
    %c0_142 = arith.constant 0 : index
    %127 = vector.load %arg10[%c2_140, %c2_141, %c0_142] : memref<10x10x8xf32, #tpu.memory_space<vmem>>, vector<8x8x8xf32>
    %128 = vector.shape_cast %127 : vector<8x8x8xf32> to vector<64x8xf32>
    %c8_143 = arith.constant 8 : index
    %c0_144 = arith.constant 0 : index
    %c0_145 = arith.constant 0 : index
    %129 = vector.load %arg5[%c8_143, %c0_144, %c0_145] : memref<9x8x8xf32, #tpu.memory_space<vmem>>, vector<1x8x8xf32>
    %130 = vector.shape_cast %129 : vector<1x8x8xf32> to vector<8x8xf32>
    %cst_146 = arith.constant dense<0.000000e+00> : vector<64x8xf32>
    %131 = tpu.matmul %128, %130, %cst_146 {dimension_numbers = #tpu.dot_dimension_numbers<[1], [0], [0], [1], [0, 0, 1, 1], [], []>} : vector<64x8xf32>, vector<8x8xf32>, vector<64x8xf32> -> vector<64x8xf32>
    %132 = arith.addf %126, %131 : vector<64x8xf32>
    %c0_147 = arith.constant 0 : index
    %c0_148 = arith.constant 0 : index
    %133 = vector.load %arg6[%c0_147, %c0_148] : memref<1x8xf32, #tpu.memory_space<vmem>>, vector<1x8xf32>
    %134 = vector.broadcast %133 : vector<1x8xf32> to vector<64x8xf32>
    %135 = arith.mulf %132, %134 : vector<64x8xf32>
    %c0_149 = arith.constant 0 : index
    %c0_150 = arith.constant 0 : index
    %136 = vector.load %arg7[%c0_149, %c0_150] : memref<1x8xf32, #tpu.memory_space<vmem>>, vector<1x8xf32>
    %137 = vector.broadcast %136 : vector<1x8xf32> to vector<64x8xf32>
    %138 = arith.addf %135, %137 : vector<64x8xf32>
    %cst_151 = arith.constant 0.000000e+00 : f32
    %139 = vector.broadcast %cst_151 : f32 to vector<64x8xf32>
    %140 = arith.maximumf %138, %139 : vector<64x8xf32>
    %141 = vector.shape_cast %140 : vector<64x8xf32> to vector<8x8x8xf32>
    %c0_152 = arith.constant 0 : index
    %c0_153 = arith.constant 0 : index
    %c0_154 = arith.constant 0 : index
    %c0_155 = arith.constant 0 : index
    %142 = vector.load %arg8[%c0_152, %c0_153, %c0_154, %c0_155] : memref<1x8x8x8xf32, #tpu.memory_space<vmem>>, vector<1x8x8x8xf32>
    %143 = vector.shape_cast %142 : vector<1x8x8x8xf32> to vector<8x8x8xf32>
    %144 = vector.shape_cast %141 : vector<8x8x8xf32> to vector<1x8x8x8xf32>
    tpu.vector_store %arg8[%c0_152, %c0_153, %c0_154, %c0_155], %144 {strides = array<i32>} : memref<1x8x8x8xf32, #tpu.memory_space<vmem>>, vector<1x8x8x8xf32>,
    return
  }
  func.func @transform_0(%arg0: i32) -> (i32, i32, i32, i32, i32) {
    %c0_i32 = arith.constant 0 : i32
    %c0_i32_0 = arith.constant 0 : i32
    %c0_i32_1 = arith.constant 0 : i32
    %c0_i32_2 = arith.constant 0 : i32
    %c0_i32_3 = arith.constant 0 : i32
    return %arg0, %c0_i32, %c0_i32_0, %c0_i32_1, %c0_i32_2 : i32, i32, i32, i32, i32
  }
  func.func @transform_1(%arg0: i32) -> (i32, i32, i32) {
    %c0_i32 = arith.constant 0 : i32
    %c0_i32_0 = arith.constant 0 : i32
    %c0_i32_1 = arith.constant 0 : i32
    %c0_i32_2 = arith.constant 0 : i32
    return %c0_i32, %c0_i32_0, %c0_i32_1 : i32, i32, i32
  }
  func.func @transform_2(%arg0: i32) -> (i32, i32) {
    %c0_i32 = arith.constant 0 : i32
    %c0_i32_0 = arith.constant 0 : i32
    %c0_i32_1 = arith.constant 0 : i32
    return %c0_i32, %c0_i32_0 : i32, i32
  }
  func.func @transform_3(%arg0: i32) -> (i32, i32) {
    %c0_i32 = arith.constant 0 : i32
    %c0_i32_0 = arith.constant 0 : i32
    %c0_i32_1 = arith.constant 0 : i32
    return %c0_i32, %c0_i32_0 : i32, i32
  }
  func.func @transform_4(%arg0: i32) -> (i32, i32, i32) {
    %c0_i32 = arith.constant 0 : i32
    %c0_i32_0 = arith.constant 0 : i32
    %c0_i32_1 = arith.constant 0 : i32
    %c0_i32_2 = arith.constant 0 : i32
    return %c0_i32, %c0_i32_0, %c0_i32_1 : i32, i32, i32
  }
  func.func @transform_5(%arg0: i32) -> (i32, i32) {
    %c0_i32 = arith.constant 0 : i32
    %c0_i32_0 = arith.constant 0 : i32
    %c0_i32_1 = arith.constant 0 : i32
    return %c0_i32, %c0_i32_0 : i32, i32
  }
  func.func @transform_6(%arg0: i32) -> (i32, i32) {
    %c0_i32 = arith.constant 0 : i32
    %c0_i32_0 = arith.constant 0 : i32
    %c0_i32_1 = arith.constant 0 : i32
    return %c0_i32, %c0_i32_0 : i32, i32
  }
  func.func @transform_7(%arg0: i32) -> (i32, i32, i32, i32) {
    %c0_i32 = arith.constant 0 : i32
    %c0_i32_0 = arith.constant 0 : i32
    %c0_i32_1 = arith.constant 0 : i32
    %c0_i32_2 = arith.constant 0 : i32
    return %arg0, %c0_i32, %c0_i32_0, %c0_i32_1 : i32, i32, i32, i32
  }
}

</mosaic_0001>

<llo_original>
// kernel: down_forward.1
$region0: #{down_forward.1}
  #allocation0 [shape = 'u32[]', space=smem, size = 0x4, offset = 0x4, fixed_abs, tag = 'smem constant byte address 0x4 - core index']
  #allocation1 [shape = 'u32[72,128]{1,0:T(1,128)}', space=vmem, size = 0x9000, scoped, tag = 'internal scratch']
  #allocation2 [shape = 'f32[10,10,4]{2,1,0:T(8,128)}', space=vmem, size = 0x14000, scoped, tag = 'scratch operand']
  #allocation3 [shape = 'f32[10,10,8]{2,1,0:T(8,128)}', space=vmem, size = 0x14000, scoped, tag = 'scratch operand']
  %s0 = inlined_call_operand.vmem [shape: f32[2,8,2,8,8], index: 0, kind: input, shape index: {}]
  %s1 = inlined_call_operand.vmem [shape: f32[9,4,8], index: 1, kind: input, shape index: {}]
  %s2 = inlined_call_operand.vmem [shape: f32[1,8], index: 2, kind: input, shape index: {}]
  %s3 = inlined_call_operand.vmem [shape: f32[1,8], index: 3, kind: input, shape index: {}]
  %s4 = inlined_call_operand.vmem [shape: f32[9,8,8], index: 4, kind: input, shape index: {}]
  %s5 = inlined_call_operand.vmem [shape: f32[1,8], index: 5, kind: input, shape index: {}]
  %s6 = inlined_call_operand.vmem [shape: f32[1,8], index: 6, kind: input, shape index: {}]
  %s7 = inlined_call_operand.vmem [shape: f32[2,8,8,8], index: 7, kind: output, shape index: {}]
  %s8 = sld [smem:[#allocation0]]
  $region61: #{down_forward.1} parent=0
    _
  %s10 = ssub.s32 1, %s8
  %s11 = scalar_select 0, %s10, %s8
  loop: start=0, step=1, limit=4
  $region2: #{down_forward.1} parent=0 // loop_pre_header
    _
  $region3: #{down_forward.1} parent=0 // loop_header
    %s13 = sphi 0, %s17
    %p14 = scmp.ge.s32.totalorder %s13, 4
    %s23 = sphi 0, %s25
    %s26 = sphi 0, %s23
    %s27 = sphi 0, %s26
    %s43 = sphi 0, %s27
    %s47 = sphi 0, %s47
    %s49 = sphi 0, %s47
    %s50 = sphi 0, %s49
    %s64 = sphi 0, %s50
    %s68 = sphi 0, %s68
    %s70 = sphi 0, %s68
    %s71 = sphi 0, %s70
    %s85 = sphi 0, %s71
    %s89 = sphi 0, %s89
    %s91 = sphi 0, %s89
    %s92 = sphi 0, %s91
    %s106 = sphi 0, %s92
    %s110 = sphi 0, %s110
    %s112 = sphi 0, %s110
    %s113 = sphi 0, %s112
    %s127 = sphi 0, %s113
    %s131 = sphi 0, %s131
    %s133 = sphi 0, %s131
    %s134 = sphi 0, %s133
    %s148 = sphi 0, %s134
    %s152 = sphi 0, %s152
    %s154 = sphi 0, %s152
    %s155 = sphi 0, %s154
    %s169 = sphi 0, %s155
    %s175 = sphi 0, %s177
    %s178 = sphi 0, %s175
    %s179 = sphi 0, %s178
    %s195 = sphi 0, %s179
  $region4: #{down_forward.1} parent=0 // loop_header_branch
    %16 = sbr.rel (%p14) target = $region8
  $region5: #{down_forward.1} parent=0 // loop_body
    %s18 = ssub.s32 %s13, 1
    %s19 = ssub.s32 %s13, 2
    %s20 = sadd.s32 %s13, 1
    %s21 = ssub.s32 %s13, %s20
    %p22 = scmp.eq.s32.totalorder %s21, 0
    %s24 = sadd.s32 %s23, 1
    %s25 = scalar_select %p22, %s23, %s24
    %p28 = pneg %p22
    %p29 = scmp.eq.s32.totalorder %s13, 1
    %p30 = por %p28, %p29
    %p31 = scmp.ne.s32.totalorder %s23, %s26
    %p32 = scmp.eq.s32.totalorder %s13, 0
    %p33 = por %p31, %p32
    %p34 = scmp.ne.s32.totalorder %s23, %s26
    %p35 = scmp.eq.s32.totalorder %s18, 1
    %p36 = por %p34, %p35
    %p37 = scmp.ne.s32.totalorder %s26, %s27
    %p38 = scmp.eq.s32.totalorder %s18, 0
    %p39 = por %p37, %p38
    %p40 = scmp.ne.s32.totalorder %s26, %s27
    %p41 = scmp.eq.s32.totalorder %s19, 1
    %p42 = por %p40, %p41
    %p44 = scmp.ne.s32.totalorder %s27, %s43
    %p45 = scmp.eq.s32.totalorder %s19, 0
    %p46 = por %p44, %p45
    %s48 = sadd.s32 %s47, 1
    %p51 = scmp.eq.s32.totalorder %s13, 1
    %p52 = scmp.ne.s32.totalorder %s47, %s49
    %p53 = scmp.eq.s32.totalorder %s13, 0
    %p54 = por %p52, %p53
    %p55 = scmp.ne.s32.totalorder %s47, %s49
    %p56 = scmp.eq.s32.totalorder %s18, 1
    %p57 = por %p55, %p56
    %p58 = scmp.ne.s32.totalorder %s49, %s50
    %p59 = scmp.eq.s32.totalorder %s18, 0
    %p60 = por %p58, %p59
    %p61 = scmp.ne.s32.totalorder %s49, %s50
    %p62 = scmp.eq.s32.totalorder %s19, 1
    %p63 = por %p61, %p62
    %p65 = scmp.ne.s32.totalorder %s50, %s64
    %p66 = scmp.eq.s32.totalorder %s19, 0
    %p67 = por %p65, %p66
    %s69 = sadd.s32 %s68, 1
    %p72 = scmp.eq.s32.totalorder %s13, 1
    %p73 = scmp.ne.s32.totalorder %s68, %s70
    %p74 = scmp.eq.s32.totalorder %s13, 0
    %p75 = por %p73, %p74
    %p76 = scmp.ne.s32.totalorder %s68, %s70
    %p77 = scmp.eq.s32.totalorder %s18, 1
    %p78 = por %p76, %p77
    %p79 = scmp.ne.s32.totalorder %s70, %s71
    %p80 = scmp.eq.s32.totalorder %s18, 0
    %p81 = por %p79, %p80
    %p82 = scmp.ne.s32.totalorder %s70, %s71
    %p83 = scmp.eq.s32.totalorder %s19, 1
    %p84 = por %p82, %p83
    %p86 = scmp.ne.s32.totalorder %s71, %s85
    %p87 = scmp.eq.s32.totalorder %s19, 0
    %p88 = por %p86, %p87
    %s90 = sadd.s32 %s89, 1
    %p93 = scmp.eq.s32.totalorder %s13, 1
    %p94 = scmp.ne.s32.totalorder %s89, %s91
    %p95 = scmp.eq.s32.totalorder %s13, 0
    %p96 = por %p94, %p95
    %p97 = scmp.ne.s32.totalorder %s89, %s91
    %p98 = scmp.eq.s32.totalorder %s18, 1
    %p99 = por %p97, %p98
    %p100 = scmp.ne.s32.totalorder %s91, %s92
    %p101 = scmp.eq.s32.totalorder %s18, 0
    %p102 = por %p100, %p101
    %p103 = scmp.ne.s32.totalorder %s91, %s92
    %p104 = scmp.eq.s32.totalorder %s19, 1
    %p105 = por %p103, %p104
    %p107 = scmp.ne.s32.totalorder %s92, %s106
    %p108 = scmp.eq.s32.totalorder %s19, 0
    %p109 = por %p107, %p108
    %s111 = sadd.s32 %s110, 1
    %p114 = scmp.eq.s32.totalorder %s13, 1
    %p115 = scmp.ne.s32.totalorder %s110, %s112
    %p116 = scmp.eq.s32.totalorder %s13, 0
    %p117 = por %p115, %p116
    %p118 = scmp.ne.s32.totalorder %s110, %s112
    %p119 = scmp.eq.s32.totalorder %s18, 1
    %p120 = por %p118, %p119
    %p121 = scmp.ne.s32.totalorder %s112, %s113
    %p122 = scmp.eq.s32.totalorder %s18, 0
    %p123 = por %p121, %p122
    %p124 = scmp.ne.s32.totalorder %s112, %s113
    %p125 = scmp.eq.s32.totalorder %s19, 1
    %p126 = por %p124, %p125
    %p128 = scmp.ne.s32.totalorder %s113, %s127
    %p129 = scmp.eq.s32.totalorder %s19, 0
    %p130 = por %p128, %p129
    %s132 = sadd.s32 %s131, 1
    %p135 = scmp.eq.s32.totalorder %s13, 1
    %p136 = scmp.ne.s32.totalorder %s131, %s133
    %p137 = scmp.eq.s32.totalorder %s13, 0
    %p138 = por %p136, %p137
    %p139 = scmp.ne.s32.totalorder %s131, %s133
    %p140 = scmp.eq.s32.totalorder %s18, 1
    %p141 = por %p139, %p140
    %p142 = scmp.ne.s32.totalorder %s133, %s134
    %p143 = scmp.eq.s32.totalorder %s18, 0
    %p144 = por %p142, %p143
    %p145 = scmp.ne.s32.totalorder %s133, %s134
    %p146 = scmp.eq.s32.totalorder %s19, 1
    %p147 = por %p145, %p146
    %p149 = scmp.ne.s32.totalorder %s134, %s148
    %p150 = scmp.eq.s32.totalorder %s19, 0
    %p151 = por %p149, %p150
    %s153 = sadd.s32 %s152, 1
    %p156 = scmp.eq.s32.totalorder %s13, 1
    %p157 = scmp.ne.s32.totalorder %s152, %s154
    %p158 = scmp.eq.s32.totalorder %s13, 0
    %p159 = por %p157, %p158
    %p160 = scmp.ne.s32.totalorder %s152, %s154
    %p161 = scmp.eq.s32.totalorder %s18, 1
    %p162 = por %p160, %p161
    %p163 = scmp.ne.s32.totalorder %s154, %s155
    %p164 = scmp.eq.s32.totalorder %s18, 0
    %p165 = por %p163, %p164
    %p166 = scmp.ne.s32.totalorder %s154, %s155
    %p167 = scmp.eq.s32.totalorder %s19, 1
    %p168 = por %p166, %p167
    %p170 = scmp.ne.s32.totalorder %s155, %s169
    %p171 = scmp.eq.s32.totalorder %s19, 0
    %p172 = por %p170, %p171
    %s173 = ssub.s32 %s13, %s20
    %p174 = scmp.eq.s32.totalorder %s173, 0
    %s176 = sadd.s32 %s175, 1
    %s177 = scalar_select %p174, %s175, %s176
    %p180 = pneg %p174
    %p181 = scmp.eq.s32.totalorder %s13, 1
    %p182 = por %p180, %p181
    %p183 = scmp.ne.s32.totalorder %s175, %s178
    %p184 = scmp.eq.s32.totalorder %s13, 0
    %p185 = por %p183, %p184
    %p186 = scmp.ne.s32.totalorder %s175, %s178
    %p187 = scmp.eq.s32.totalorder %s18, 1
    %p188 = por %p186, %p187
    %p189 = scmp.ne.s32.totalorder %s178, %s179
    %p190 = scmp.eq.s32.totalorder %s18, 0
    %p191 = por %p189, %p190
    %p192 = scmp.ne.s32.totalorder %s178, %s179
    %p193 = scmp.eq.s32.totalorder %s19, 1
    %p194 = por %p192, %p193
    %p196 = scmp.ne.s32.totalorder %s179, %s195
    %p197 = scmp.eq.s32.totalorder %s19, 0
    %p198 = por %p196, %p197
    %p199 = scmp.le.s32.totalorder 1, %s13
    %p200 = scmp.lt.s32.totalorder %s13, 3
    %p201 = pnand %p199, %p200
    %p202 = pneg %p201
    // Predicated region
    $region9: #{down_forward.1} parent=5 // pred_check
      _
    $region10: #{down_forward.1} parent=5 // pred_check_branch
      %204 = sbr.rel (%p201) target = $region12
    $region11: #{down_forward.1} parent=5 // pred_region
      %s205 = ssub.s32 %s13, 1
      // Predicated region
      $region13: #{down_forward.1} parent=11 // pred_check
        %p206 = pneg %p60
      $region14: #{down_forward.1} parent=11 // pred_check_branch
        %208 = sbr.rel (%p206) target = $region16
      $region15: #{down_forward.1} parent=11 // pred_region
        _
      $region16: #{down_forward.1} parent=11 // pred_fallthru
        _
      // Predicated region
      $region17: #{down_forward.1} parent=11 // pred_check
        %p209 = pneg %p81
      $region18: #{down_forward.1} parent=11 // pred_check_branch
        %211 = sbr.rel (%p209) target = $region20
      $region19: #{down_forward.1} parent=11 // pred_region
        _
      $region20: #{down_forward.1} parent=11 // pred_fallthru
        _
      // Predicated region
      $region21: #{down_forward.1} parent=11 // pred_check
        %p212 = pneg %p102
      $region22: #{down_forward.1} parent=11 // pred_check_branch
        %214 = sbr.rel (%p212) target = $region24
      $region23: #{down_forward.1} parent=11 // pred_region
        _
      $region24: #{down_forward.1} parent=11 // pred_fallthru
        _
      // Predicated region
      $region25: #{down_forward.1} parent=11 // pred_check
        %p215 = pneg %p123
      $region26: #{down_forward.1} parent=11 // pred_check_branch
        %217 = sbr.rel (%p215) target = $region28
      $region27: #{down_forward.1} parent=11 // pred_region
        _
      $region28: #{down_forward.1} parent=11 // pred_fallthru
        _
      // Predicated region
      $region29: #{down_forward.1} parent=11 // pred_check
        %p218 = pneg %p144
      $region30: #{down_forward.1} parent=11 // pred_check_branch
        %220 = sbr.rel (%p218) target = $region32
      $region31: #{down_forward.1} parent=11 // pred_region
        _
      $region32: #{down_forward.1} parent=11 // pred_fallthru
        _
      // Predicated region
      $region33: #{down_forward.1} parent=11 // pred_check
        %p221 = pneg %p165
      $region34: #{down_forward.1} parent=11 // pred_check_branch
        %223 = sbr.rel (%p221) target = $region36
      $region35: #{down_forward.1} parent=11 // pred_region
        _
      $region36: #{down_forward.1} parent=11 // pred_fallthru
        _
    $region12: #{down_forward.1} parent=5 // pred_fallthru
      _
    %p224 = scmp.lt.s32.totalorder %s13, 2
    // Predicated region
    $region37: #{down_forward.1} parent=5 // pred_check
      %p225 = pneg %p224
    $region38: #{down_forward.1} parent=5 // pred_check_branch
      %227 = sbr.rel (%p225) target = $region40
    $region39: #{down_forward.1} parent=5 // pred_region
      // Predicated region
      $region41: #{down_forward.1} parent=39 // pred_check
        %p228 = pneg %p33
      $region42: #{down_forward.1} parent=39 // pred_check_branch
        %230 = sbr.rel (%p228) target = $region44
      $region43: #{down_forward.1} parent=39 // pred_region
        %p231 = scmp.lt.s32.totalorder %s13, 1
        %s232 = scalar_select %p231, %s13, 1
        %s233 = smul.addr %s232, 16
        %s234 = smul.addr %s233, 8
        %s235 = scalar_lea.vmem %s0, %s234
      $region44: #{down_forward.1} parent=39 // pred_fallthru
        _
    $region40: #{down_forward.1} parent=5 // pred_fallthru
      _
    %p236 = scmp.le.s32.totalorder 1, %s13
    %p237 = scmp.lt.s32.totalorder %s13, 3
    %p238 = pnand %p236, %p237
    %p239 = pneg %p238
    // Predicated region
    $region45: #{down_forward.1} parent=5 // pred_check
      _
    $region46: #{down_forward.1} parent=5 // pred_check_branch
      %241 = sbr.rel (%p238) target = $region48
    $region47: #{down_forward.1} parent=5 // pred_region
      %s242 = ssub.s32 %s13, 1
      %p243 = scmp.lt.s32.totalorder %s18, 1
      %s244 = scalar_select %p243, %s18, 1
      %s245 = smul.addr %s244, 16
      %s246 = smul.addr %s245, 8
      %s247 = scalar_lea.vmem %s0, %s246
      %p248 = pneg %p39
      %p249 = pneg %p36
      %p250 = pneg %p60
      %p251 = pneg %p57
      %p252 = pneg %p81
      %p253 = pneg %p78
      %p254 = pneg %p102
      %p255 = pneg %p99
      %p256 = pneg %p123
      %p257 = pneg %p120
      %p258 = pneg %p144
      %p259 = pneg %p141
      %p260 = pneg %p165
      %p261 = pneg %p162
      %p262 = pneg %p191
      %p263 = pneg %p188
      %p264 = scmp.lt.s32.totalorder %s18, 1
      %s265 = scalar_select %p264, %s18, 1
      %s266 = smul.addr %s265, 8
      %s267 = smul.addr %s266, 8
      %s268 = scalar_lea.vmem %s7, %s267
      %p269 = scmp.lt.s32.totalorder %s18, 1
      %s270 = scalar_select %p269, %s18, 1
      %s271 = smul.addr %s270, 16
      %s272 = smul.addr %s271, 8
      %s273 = scalar_lea.vmem %s0, %s272
      %p274 = scmp.lt.s32.totalorder %s18, 1
      %s275 = scalar_select %p274, %s18, 1
      %s276 = smul.addr %s275, 8
      %s277 = smul.addr %s276, 8
      %s278 = scalar_lea.vmem %s7, %s277
      %v279 = vld [vmem:[%s273] sm:$0xff]
      %v280 = vld [vmem:[%s273 + $0x10] sm:$0xff]
      %v281 = vld [vmem:[%s273 + $0x20] sm:$0xff]
      %v282 = vld [vmem:[%s273 + $0x30] sm:$0xff]
      %v283 = vld [vmem:[%s273 + $0x40] sm:$0xff]
      %v284 = vld [vmem:[%s273 + $0x50] sm:$0xff]
      %v285 = vld [vmem:[%s273 + $0x60] sm:$0xff]
      %v286 = vld [vmem:[%s273 + $0x70] sm:$0xff]
      %s287 = scalar_lea.vmem %s273, 8
      %v288 = vld [vmem:[%s287] sm:$0xff]
      %v289 = vld [vmem:[%s287 + $0x10] sm:$0xff]
      %v290 = vld [vmem:[%s287 + $0x20] sm:$0xff]
      %v291 = vld [vmem:[%s287 + $0x30] sm:$0xff]
      %v292 = vld [vmem:[%s287 + $0x40] sm:$0xff]
      %v293 = vld [vmem:[%s287 + $0x50] sm:$0xff]
      %v294 = vld [vmem:[%s287 + $0x60] sm:$0xff]
      %v295 = vld [vmem:[%s287 + $0x70] sm:$0xff]
      %v296 = vmax.f32 %v279, %v288
      %v297 = vmax.f32 %v280, %v289
      %v298 = vmax.f32 %v281, %v290
      %v299 = vmax.f32 %v282, %v291
      %v300 = vmax.f32 %v283, %v292
      %v301 = vmax.f32 %v284, %v293
      %v302 = vmax.f32 %v285, %v294
      %v303 = vmax.f32 %v286, %v295
      %312 = vrot.lane.b32.xlu0 %v296, 124
      %v313 = vpop.permute.xlu0 %312
      %314 = vrot.lane.b32.xlu0 %v297, 124
      %v315 = vpop.permute.xlu0 %314
      %316 = vrot.lane.b32.xlu0 %v298, 124
      %v317 = vpop.permute.xlu0 %316
      %318 = vrot.lane.b32.xlu0 %v299, 124
      %v319 = vpop.permute.xlu0 %318
      %320 = vrot.lane.b32.xlu0 %v300, 124
      %v321 = vpop.permute.xlu0 %320
      %322 = vrot.lane.b32.xlu0 %v301, 124
      %v323 = vpop.permute.xlu0 %322
      %324 = vrot.lane.b32.xlu0 %v302, 124
      %v325 = vpop.permute.xlu0 %324
      %326 = vrot.lane.b32.xlu0 %v303, 124
      %v327 = vpop.permute.xlu0 %326
      %v336 = vmax.f32 %v296, %v313
      %v337 = vmax.f32 %v297, %v315
      %v338 = vmax.f32 %v298, %v317
      %v339 = vmax.f32 %v299, %v319
      %v340 = vmax.f32 %v300, %v321
      %v341 = vmax.f32 %v301, %v323
      %v342 = vmax.f32 %v302, %v325
      %v343 = vmax.f32 %v303, %v327
      %vm344 = vcmask 31744
      %345 = vst.msk [vmem:[#allocation2] sm:$0xff] %vm344, 0.0
      %vm346 = vcmask 25600
      %347 = vst.msk [vmem:[#allocation2 + $0x8] sm:$0x3] %vm346, 0.0
      %348 = vst.msk [vmem:[#allocation2 + $0x10] sm:$0xff] %vm344, 0.0
      %349 = vst.msk [vmem:[#allocation2 + $0x18] sm:$0x3] %vm346, 0.0
      %350 = vst.msk [vmem:[#allocation2 + $0x20] sm:$0xff] %vm344, 0.0
      %351 = vst.msk [vmem:[#allocation2 + $0x28] sm:$0x3] %vm346, 0.0
      %352 = vst.msk [vmem:[#allocation2 + $0x30] sm:$0xff] %vm344, 0.0
      %353 = vst.msk [vmem:[#allocation2 + $0x38] sm:$0x3] %vm346, 0.0
      %354 = vst.msk [vmem:[#allocation2 + $0x40] sm:$0xff] %vm344, 0.0
      %355 = vst.msk [vmem:[#allocation2 + $0x48] sm:$0x3] %vm346, 0.0
      %356 = vst.msk [vmem:[#allocation2 + $0x50] sm:$0xff] %vm344, 0.0
      %357 = vst.msk [vmem:[#allocation2 + $0x58] sm:$0x3] %vm346, 0.0
      %358 = vst.msk [vmem:[#allocation2 + $0x60] sm:$0xff] %vm344, 0.0
      %359 = vst.msk [vmem:[#allocation2 + $0x68] sm:$0x3] %vm346, 0.0
      %360 = vst.msk [vmem:[#allocation2 + $0x70] sm:$0xff] %vm344, 0.0
      %361 = vst.msk [vmem:[#allocation2 + $0x78] sm:$0x3] %vm346, 0.0
      %362 = vst.msk [vmem:[#allocation2 + $0x80] sm:$0xff] %vm344, 0.0
      %363 = vst.msk [vmem:[#allocation2 + $0x88] sm:$0x3] %vm346, 0.0
      %364 = vst.msk [vmem:[#allocation2 + $0x90] sm:$0xff] %vm344, 0.0
      %365 = vst.msk [vmem:[#allocation2 + $0x98] sm:$0x3] %vm346, 0.0
      %s366 = scalar_lea.vmem [#allocation2], 16
      %367 = vst.msk [vmem:[%s366 + $0x1] sm:$0xff] %vm344, %v336
      %368 = vst.msk [vmem:[%s366 + $0x11] sm:$0xff] %vm344, %v337
      %369 = vst.msk [vmem:[%s366 + $0x21] sm:$0xff] %vm344, %v338
      %370 = vst.msk [vmem:[%s366 + $0x31] sm:$0xff] %vm344, %v339
      %371 = vst.msk [vmem:[%s366 + $0x41] sm:$0xff] %vm344, %v340
      %372 = vst.msk [vmem:[%s366 + $0x51] sm:$0xff] %vm344, %v341
      %373 = vst.msk [vmem:[%s366 + $0x61] sm:$0xff] %vm344, %v342
      %374 = vst.msk [vmem:[%s366 + $0x71] sm:$0xff] %vm344, %v343
      %v375 = vld [vmem:[#allocation2] sm:$0xff]
      %v376 = vld [vmem:[#allocation2 + $0x10] sm:$0xff]
      %v377 = vld [vmem:[#allocation2 + $0x20] sm:$0xff]
      %v378 = vld [vmem:[#allocation2 + $0x30] sm:$0xff]
      %v379 = vld [vmem:[#allocation2 + $0x40] sm:$0xff]
      %v380 = vld [vmem:[#allocation2 + $0x50] sm:$0xff]
      %v381 = vld [vmem:[#allocation2 + $0x60] sm:$0xff]
      %v382 = vld [vmem:[#allocation2 + $0x70] sm:$0xff]
      %v383 = vld [vmem:[%s1] sm:$0xf]
      %v384 = vld [vmem:[#allocation2 + $0x1] sm:$0xff]
      %v385 = vld [vmem:[#allocation2 + $0x11] sm:$0xff]
      %v386 = vld [vmem:[#allocation2 + $0x21] sm:$0xff]
      %v387 = vld [vmem:[#allocation2 + $0x31] sm:$0xff]
      %v388 = vld [vmem:[#allocation2 + $0x41] sm:$0xff]
      %v389 = vld [vmem:[#allocation2 + $0x51] sm:$0xff]
      %v390 = vld [vmem:[#allocation2 + $0x61] sm:$0xff]
      %v391 = vld [vmem:[#allocation2 + $0x71] sm:$0xff]
      %s392 = scalar_lea.vmem %s1, 4
      %v393 = vld [vmem:[%s392] sm:$0xf]
      %v395 = vsel %vm344, %v384, 0
      %v398 = vsel %vm344, %v385, 0
      %v401 = vsel %vm344, %v386, 0
      %v404 = vsel %vm344, %v387, 0
      %v407 = vsel %vm344, %v388, 0
      %v410 = vsel %vm344, %v389, 0
      %v413 = vsel %vm344, %v390, 0
      %v416 = vsel %vm344, %v391, 0
      %vm418 = vcmask 1043456
      %v420 = vsel %vm418, %v393, 0
      %422 = vmatpush.msra.mxu0 0.0
      %423 = vmatpush.msra.mxu0 0.0
      %424 = vmatpush.msra.mxu0 0.0
      %425 = vmatpush.msra.mxu0 0.0
      %426 = vmatpush.msra.mxu0 0.0
      %427 = vmatpush.msra.mxu0 0.0
      %428 = vmatpush.msra.mxu0 0.0
      %429 = vmatpush.msra.mxu0 0.0
      %430 = vmatpush.msra.mxu0 0.0
      %431 = vmatpush.msra.mxu0 0.0
      %432 = vmatpush.msra.mxu0 0.0
      %433 = vmatpush.msra.mxu0 0.0
      %434 = vmatpush.msra.mxu0 0.0
      %435 = vmatpush.msra.mxu0 0.0
      %436 = vmatpush.msra.mxu0 0.0
      %437 = vmatpush.msra.mxu0 %v420
      %438 = vmatmul.f32.gmra.mxu0 %v395
      %v439 = vpop.f32.mrf.mxu0
      %v440 = vadd.f32 0.0, %v439
      %441 = vmatmul.f32.gmra.mxu0 %v398
      %v442 = vpop.f32.mrf.mxu0
      %v443 = vadd.f32 0.0, %v442
      %444 = vmatmul.f32.gmra.mxu0 %v401
      %v445 = vpop.f32.mrf.mxu0
      %v446 = vadd.f32 0.0, %v445
      %447 = vmatmul.f32.gmra.mxu0 %v404
      %v448 = vpop.f32.mrf.mxu0
      %v449 = vadd.f32 0.0, %v448
      %450 = vmatmul.f32.gmra.mxu0 %v407
      %v451 = vpop.f32.mrf.mxu0
      %v452 = vadd.f32 0.0, %v451
      %453 = vmatmul.f32.gmra.mxu0 %v410
      %v454 = vpop.f32.mrf.mxu0
      %v455 = vadd.f32 0.0, %v454
      %456 = vmatmul.f32.gmra.mxu0 %v413
      %v457 = vpop.f32.mrf.mxu0
      %v458 = vadd.f32 0.0, %v457
      %459 = vmatmul.f32.gmra.mxu0 %v416
      %v460 = vpop.f32.mrf.mxu0
      %v461 = vadd.f32 0.0, %v460
      %462 = vdwg.mxu0
      %v464 = vsel %vm344, %v375, 0
      %v467 = vsel %vm344, %v376, 0
      %v470 = vsel %vm344, %v377, 0
      %v473 = vsel %vm344, %v378, 0
      %v476 = vsel %vm344, %v379, 0
      %v479 = vsel %vm344, %v380, 0
      %v482 = vsel %vm344, %v381, 0
      %v485 = vsel %vm344, %v382, 0
      %v488 = vsel %vm418, %v383, 0
      %490 = vmatpush.msra.mxu0 0.0
      %491 = vmatpush.msra.mxu0 0.0
      %492 = vmatpush.msra.mxu0 0.0
      %493 = vmatpush.msra.mxu0 0.0
      %494 = vmatpush.msra.mxu0 0.0
      %495 = vmatpush.msra.mxu0 0.0
      %496 = vmatpush.msra.mxu0 0.0
      %497 = vmatpush.msra.mxu0 0.0
      %498 = vmatpush.msra.mxu0 0.0
      %499 = vmatpush.msra.mxu0 0.0
      %500 = vmatpush.msra.mxu0 0.0
      %501 = vmatpush.msra.mxu0 0.0
      %502 = vmatpush.msra.mxu0 0.0
      %503 = vmatpush.msra.mxu0 0.0
      %504 = vmatpush.msra.mxu0 0.0
      %505 = vmatpush.msra.mxu0 %v488
      %506 = vmatmul.f32.gmra.mxu0 %v464
      %v507 = vpop.f32.mrf.mxu0
      %v508 = vadd.f32 %v440, %v507
      %509 = vmatmul.f32.gmra.mxu0 %v467
      %v510 = vpop.f32.mrf.mxu0
      %v511 = vadd.f32 %v443, %v510
      %512 = vmatmul.f32.gmra.mxu0 %v470
      %v513 = vpop.f32.mrf.mxu0
      %v514 = vadd.f32 %v446, %v513
      %515 = vmatmul.f32.gmra.mxu0 %v473
      %v516 = vpop.f32.mrf.mxu0
      %v517 = vadd.f32 %v449, %v516
      %518 = vmatmul.f32.gmra.mxu0 %v476
      %v519 = vpop.f32.mrf.mxu0
      %v520 = vadd.f32 %v452, %v519
      %521 = vmatmul.f32.gmra.mxu0 %v479
      %v522 = vpop.f32.mrf.mxu0
      %v523 = vadd.f32 %v455, %v522
      %524 = vmatmul.f32.gmra.mxu0 %v482
      %v525 = vpop.f32.mrf.mxu0
      %v526 = vadd.f32 %v458, %v525
      %527 = vmatmul.f32.gmra.mxu0 %v485
      %v528 = vpop.f32.mrf.mxu0
      %v529 = vadd.f32 %v461, %v528
      %530 = vdwg.mxu0
      %v531 = vld [vmem:[#allocation2 + $0x2] sm:$0xff]
      %v532 = vld [vmem:[#allocation2 + $0x12] sm:$0xff]
      %v533 = vld [vmem:[#allocation2 + $0x22] sm:$0xff]
      %v534 = vld [vmem:[#allocation2 + $0x32] sm:$0xff]
      %v535 = vld [vmem:[#allocation2 + $0x42] sm:$0xff]
      %v536 = vld [vmem:[#allocation2 + $0x52] sm:$0xff]
      %v537 = vld [vmem:[#allocation2 + $0x62] sm:$0xff]
      %v538 = vld [vmem:[#allocation2 + $0x72] sm:$0xff]
      %s539 = scalar_lea.vmem %s1, 8
      %v540 = vld [vmem:[%s539] sm:$0xf]
      %v542 = vsel %vm344, %v531, 0
      %v545 = vsel %vm344, %v532, 0
      %v548 = vsel %vm344, %v533, 0
      %v551 = vsel %vm344, %v534, 0
      %v554 = vsel %vm344, %v535, 0
      %v557 = vsel %vm344, %v536, 0
      %v560 = vsel %vm344, %v537, 0
      %v563 = vsel %vm344, %v538, 0
      %v566 = vsel %vm418, %v540, 0
      %568 = vmatpush.msra.mxu0 0.0
      %569 = vmatpush.msra.mxu0 0.0
      %570 = vmatpush.msra.mxu0 0.0
      %571 = vmatpush.msra.mxu0 0.0
      %572 = vmatpush.msra.mxu0 0.0
      %573 = vmatpush.msra.mxu0 0.0
      %574 = vmatpush.msra.mxu0 0.0
      %575 = vmatpush.msra.mxu0 0.0
      %576 = vmatpush.msra.mxu0 0.0
      %577 = vmatpush.msra.mxu0 0.0
      %578 = vmatpush.msra.mxu0 0.0
      %579 = vmatpush.msra.mxu0 0.0
      %580 = vmatpush.msra.mxu0 0.0
      %581 = vmatpush.msra.mxu0 0.0
      %582 = vmatpush.msra.mxu0 0.0
      %583 = vmatpush.msra.mxu0 %v566
      %584 = vmatmul.f32.gmra.mxu0 %v542
      %v585 = vpop.f32.mrf.mxu0
      %v586 = vadd.f32 0.0, %v585
      %587 = vmatmul.f32.gmra.mxu0 %v545
      %v588 = vpop.f32.mrf.mxu0
      %v589 = vadd.f32 0.0, %v588
      %590 = vmatmul.f32.gmra.mxu0 %v548
      %v591 = vpop.f32.mrf.mxu0
      %v592 = vadd.f32 0.0, %v591
      %593 = vmatmul.f32.gmra.mxu0 %v551
      %v594 = vpop.f32.mrf.mxu0
      %v595 = vadd.f32 0.0, %v594
      %596 = vmatmul.f32.gmra.mxu0 %v554
      %v597 = vpop.f32.mrf.mxu0
      %v598 = vadd.f32 0.0, %v597
      %599 = vmatmul.f32.gmra.mxu0 %v557
      %v600 = vpop.f32.mrf.mxu0
      %v601 = vadd.f32 0.0, %v600
      %602 = vmatmul.f32.gmra.mxu0 %v560
      %v603 = vpop.f32.mrf.mxu0
      %v604 = vadd.f32 0.0, %v603
      %605 = vmatmul.f32.gmra.mxu0 %v563
      %v606 = vpop.f32.mrf.mxu0
      %v607 = vadd.f32 0.0, %v606
      %608 = vdwg.mxu0
      %v609 = vadd.f32 %v508, %v586
      %v610 = vadd.f32 %v511, %v589
      %v611 = vadd.f32 %v514, %v592
      %v612 = vadd.f32 %v517, %v595
      %v613 = vadd.f32 %v520, %v598
      %v614 = vadd.f32 %v523, %v601
      %v615 = vadd.f32 %v526, %v604
      %v616 = vadd.f32 %v529, %v607
      %v617 = vld [vmem:[%s366] sm:$0xff]
      %v618 = vld [vmem:[%s366 + $0x10] sm:$0xff]
      %v619 = vld [vmem:[%s366 + $0x20] sm:$0xff]
      %v620 = vld [vmem:[%s366 + $0x30] sm:$0xff]
      %v621 = vld [vmem:[%s366 + $0x40] sm:$0xff]
      %v622 = vld [vmem:[%s366 + $0x50] sm:$0xff]
      %v623 = vld [vmem:[%s366 + $0x60] sm:$0xff]
      %v624 = vld [vmem:[%s366 + $0x70] sm:$0xff]
      %s625 = scalar_lea.vmem %s1, 12
      %v626 = vld [vmem:[%s625] sm:$0xf]
      %v628 = vsel %vm344, %v617, 0
      %v631 = vsel %vm344, %v618, 0
      %v634 = vsel %vm344, %v619, 0
      %v637 = vsel %vm344, %v620, 0
      %v640 = vsel %vm344, %v621, 0
      %v643 = vsel %vm344, %v622, 0
      %v646 = vsel %vm344, %v623, 0
      %v649 = vsel %vm344, %v624, 0
      %v652 = vsel %vm418, %v626, 0
      %654 = vmatpush.msra.mxu0 0.0
      %655 = vmatpush.msra.mxu0 0.0
      %656 = vmatpush.msra.mxu0 0.0
      %657 = vmatpush.msra.mxu0 0.0
      %658 = vmatpush.msra.mxu0 0.0
      %659 = vmatpush.msra.mxu0 0.0
      %660 = vmatpush.msra.mxu0 0.0
      %661 = vmatpush.msra.mxu0 0.0
      %662 = vmatpush.msra.mxu0 0.0
      %663 = vmatpush.msra.mxu0 0.0
      %664 = vmatpush.msra.mxu0 0.0
      %665 = vmatpush.msra.mxu0 0.0
      %666 = vmatpush.msra.mxu0 0.0
      %667 = vmatpush.msra.mxu0 0.0
      %668 = vmatpush.msra.mxu0 0.0
      %669 = vmatpush.msra.mxu0 %v652
      %670 = vmatmul.f32.gmra.mxu0 %v628
      %v671 = vpop.f32.mrf.mxu0
      %v672 = vadd.f32 0.0, %v671
      %673 = vmatmul.f32.gmra.mxu0 %v631
      %v674 = vpop.f32.mrf.mxu0
      %v675 = vadd.f32 0.0, %v674
      %676 = vmatmul.f32.gmra.mxu0 %v634
      %v677 = vpop.f32.mrf.mxu0
      %v678 = vadd.f32 0.0, %v677
      %679 = vmatmul.f32.gmra.mxu0 %v637
      %v680 = vpop.f32.mrf.mxu0
      %v681 = vadd.f32 0.0, %v680
      %682 = vmatmul.f32.gmra.mxu0 %v640
      %v683 = vpop.f32.mrf.mxu0
      %v684 = vadd.f32 0.0, %v683
      %685 = vmatmul.f32.gmra.mxu0 %v643
      %v686 = vpop.f32.mrf.mxu0
      %v687 = vadd.f32 0.0, %v686
      %688 = vmatmul.f32.gmra.mxu0 %v646
      %v689 = vpop.f32.mrf.mxu0
      %v690 = vadd.f32 0.0, %v689
      %691 = vmatmul.f32.gmra.mxu0 %v649
      %v692 = vpop.f32.mrf.mxu0
      %v693 = vadd.f32 0.0, %v692
      %694 = vdwg.mxu0
      %v695 = vadd.f32 %v609, %v672
      %v696 = vadd.f32 %v610, %v675
      %v697 = vadd.f32 %v611, %v678
      %v698 = vadd.f32 %v612, %v681
      %v699 = vadd.f32 %v613, %v684
      %v700 = vadd.f32 %v614, %v687
      %v701 = vadd.f32 %v615, %v690
      %v702 = vadd.f32 %v616, %v693
      %v703 = vld [vmem:[%s366 + $0x1] sm:$0xff]
      %v704 = vld [vmem:[%s366 + $0x11] sm:$0xff]
      %v705 = vld [vmem:[%s366 + $0x21] sm:$0xff]
      %v706 = vld [vmem:[%s366 + $0x31] sm:$0xff]
      %v707 = vld [vmem:[%s366 + $0x41] sm:$0xff]
      %v708 = vld [vmem:[%s366 + $0x51] sm:$0xff]
      %v709 = vld [vmem:[%s366 + $0x61] sm:$0xff]
      %v710 = vld [vmem:[%s366 + $0x71] sm:$0xff]
      %s711 = scalar_lea.vmem %s1, 16
      %v712 = vld [vmem:[%s711] sm:$0xf]
      %v714 = vsel %vm344, %v703, 0
      %v717 = vsel %vm344, %v704, 0
      %v720 = vsel %vm344, %v705, 0
      %v723 = vsel %vm344, %v706, 0
      %v726 = vsel %vm344, %v707, 0
      %v729 = vsel %vm344, %v708, 0
      %v732 = vsel %vm344, %v709, 0
      %v735 = vsel %vm344, %v710, 0
      %v738 = vsel %vm418, %v712, 0
      %740 = vmatpush.msra.mxu0 0.0
      %741 = vmatpush.msra.mxu0 0.0
      %742 = vmatpush.msra.mxu0 0.0
      %743 = vmatpush.msra.mxu0 0.0
      %744 = vmatpush.msra.mxu0 0.0
      %745 = vmatpush.msra.mxu0 0.0
      %746 = vmatpush.msra.mxu0 0.0
      %747 = vmatpush.msra.mxu0 0.0
      %748 = vmatpush.msra.mxu0 0.0
      %749 = vmatpush.msra.mxu0 0.0
      %750 = vmatpush.msra.mxu0 0.0
      %751 = vmatpush.msra.mxu0 0.0
      %752 = vmatpush.msra.mxu0 0.0
      %753 = vmatpush.msra.mxu0 0.0
      %754 = vmatpush.msra.mxu0 0.0
      %755 = vmatpush.msra.mxu0 %v738
      %756 = vmatmul.f32.gmra.mxu0 %v714
      %v757 = vpop.f32.mrf.mxu0
      %v758 = vadd.f32 0.0, %v757
      %759 = vmatmul.f32.gmra.mxu0 %v717
      %v760 = vpop.f32.mrf.mxu0
      %v761 = vadd.f32 0.0, %v760
      %762 = vmatmul.f32.gmra.mxu0 %v720
      %v763 = vpop.f32.mrf.mxu0
      %v764 = vadd.f32 0.0, %v763
      %765 = vmatmul.f32.gmra.mxu0 %v723
      %v766 = vpop.f32.mrf.mxu0
      %v767 = vadd.f32 0.0, %v766
      %768 = vmatmul.f32.gmra.mxu0 %v726
      %v769 = vpop.f32.mrf.mxu0
      %v770 = vadd.f32 0.0, %v769
      %771 = vmatmul.f32.gmra.mxu0 %v729
      %v772 = vpop.f32.mrf.mxu0
      %v773 = vadd.f32 0.0, %v772
      %774 = vmatmul.f32.gmra.mxu0 %v732
      %v775 = vpop.f32.mrf.mxu0
      %v776 = vadd.f32 0.0, %v775
      %777 = vmatmul.f32.gmra.mxu0 %v735
      %v778 = vpop.f32.mrf.mxu0
      %v779 = vadd.f32 0.0, %v778
      %780 = vdwg.mxu0
      %v781 = vadd.f32 %v695, %v758
      %v782 = vadd.f32 %v696, %v761
      %v783 = vadd.f32 %v697, %v764
      %v784 = vadd.f32 %v698, %v767
      %v785 = vadd.f32 %v699, %v770
      %v786 = vadd.f32 %v700, %v773
      %v787 = vadd.f32 %v701, %v776
      %v788 = vadd.f32 %v702, %v779
      %v789 = vld [vmem:[%s366 + $0x2] sm:$0xff]
      %v790 = vld [vmem:[%s366 + $0x12] sm:$0xff]
      %v791 = vld [vmem:[%s366 + $0x22] sm:$0xff]
      %v792 = vld [vmem:[%s366 + $0x32] sm:$0xff]
      %v793 = vld [vmem:[%s366 + $0x42] sm:$0xff]
      %v794 = vld [vmem:[%s366 + $0x52] sm:$0xff]
      %v795 = vld [vmem:[%s366 + $0x62] sm:$0xff]
      %v796 = vld [vmem:[%s366 + $0x72] sm:$0xff]
      %s797 = scalar_lea.vmem %s1, 20
      %v798 = vld [vmem:[%s797] sm:$0xf]
      %v800 = vsel %vm344, %v789, 0
      %v803 = vsel %vm344, %v790, 0
      %v806 = vsel %vm344, %v791, 0
      %v809 = vsel %vm344, %v792, 0
      %v812 = vsel %vm344, %v793, 0
      %v815 = vsel %vm344, %v794, 0
      %v818 = vsel %vm344, %v795, 0
      %v821 = vsel %vm344, %v796, 0
      %v824 = vsel %vm418, %v798, 0
      %826 = vmatpush.msra.mxu0 0.0
      %827 = vmatpush.msra.mxu0 0.0
      %828 = vmatpush.msra.mxu0 0.0
      %829 = vmatpush.msra.mxu0 0.0
      %830 = vmatpush.msra.mxu0 0.0
      %831 = vmatpush.msra.mxu0 0.0
      %832 = vmatpush.msra.mxu0 0.0
      %833 = vmatpush.msra.mxu0 0.0
      %834 = vmatpush.msra.mxu0 0.0
      %835 = vmatpush.msra.mxu0 0.0
      %836 = vmatpush.msra.mxu0 0.0
      %837 = vmatpush.msra.mxu0 0.0
      %838 = vmatpush.msra.mxu0 0.0
      %839 = vmatpush.msra.mxu0 0.0
      %840 = vmatpush.msra.mxu0 0.0
      %841 = vmatpush.msra.mxu0 %v824
      %842 = vmatmul.f32.gmra.mxu0 %v800
      %v843 = vpop.f32.mrf.mxu0
      %v844 = vadd.f32 0.0, %v843
      %845 = vmatmul.f32.gmra.mxu0 %v803
      %v846 = vpop.f32.mrf.mxu0
      %v847 = vadd.f32 0.0, %v846
      %848 = vmatmul.f32.gmra.mxu0 %v806
      %v849 = vpop.f32.mrf.mxu0
      %v850 = vadd.f32 0.0, %v849
      %851 = vmatmul.f32.gmra.mxu0 %v809
      %v852 = vpop.f32.mrf.mxu0
      %v853 = vadd.f32 0.0, %v852
      %854 = vmatmul.f32.gmra.mxu0 %v812
      %v855 = vpop.f32.mrf.mxu0
      %v856 = vadd.f32 0.0, %v855
      %857 = vmatmul.f32.gmra.mxu0 %v815
      %v858 = vpop.f32.mrf.mxu0
      %v859 = vadd.f32 0.0, %v858
      %860 = vmatmul.f32.gmra.mxu0 %v818
      %v861 = vpop.f32.mrf.mxu0
      %v862 = vadd.f32 0.0, %v861
      %863 = vmatmul.f32.gmra.mxu0 %v821
      %v864 = vpop.f32.mrf.mxu0
      %v865 = vadd.f32 0.0, %v864
      %866 = vdwg.mxu0
      %v867 = vadd.f32 %v781, %v844
      %v868 = vadd.f32 %v782, %v847
      %v869 = vadd.f32 %v783, %v850
      %v870 = vadd.f32 %v784, %v853
      %v871 = vadd.f32 %v785, %v856
      %v872 = vadd.f32 %v786, %v859
      %v873 = vadd.f32 %v787, %v862
      %v874 = vadd.f32 %v788, %v865
      %s875 = scalar_lea.vmem [#allocation2], 32
      %v876 = vld [vmem:[%s875] sm:$0xff]
      %v877 = vld [vmem:[%s875 + $0x10] sm:$0xff]
      %v878 = vld [vmem:[%s875 + $0x20] sm:$0xff]
      %v879 = vld [vmem:[%s875 + $0x30] sm:$0xff]
      %v880 = vld [vmem:[%s875 + $0x40] sm:$0xff]
      %v881 = vld [vmem:[%s875 + $0x50] sm:$0xff]
      %v882 = vld [vmem:[%s875 + $0x60] sm:$0xff]
      %v883 = vld [vmem:[%s875 + $0x70] sm:$0xff]
      %s884 = scalar_lea.vmem %s1, 24
      %v885 = vld [vmem:[%s884] sm:$0xf]
      %v887 = vsel %vm344, %v876, 0
      %v890 = vsel %vm344, %v877, 0
      %v893 = vsel %vm344, %v878, 0
      %v896 = vsel %vm344, %v879, 0
      %v899 = vsel %vm344, %v880, 0
      %v902 = vsel %vm344, %v881, 0
      %v905 = vsel %vm344, %v882, 0
      %v908 = vsel %vm344, %v883, 0
      %v911 = vsel %vm418, %v885, 0
      %913 = vmatpush.msra.mxu0 0.0
      %914 = vmatpush.msra.mxu0 0.0
      %915 = vmatpush.msra.mxu0 0.0
      %916 = vmatpush.msra.mxu0 0.0
      %917 = vmatpush.msra.mxu0 0.0
      %918 = vmatpush.msra.mxu0 0.0
      %919 = vmatpush.msra.mxu0 0.0
      %920 = vmatpush.msra.mxu0 0.0
      %921 = vmatpush.msra.mxu0 0.0
      %922 = vmatpush.msra.mxu0 0.0
      %923 = vmatpush.msra.mxu0 0.0
      %924 = vmatpush.msra.mxu0 0.0
      %925 = vmatpush.msra.mxu0 0.0
      %926 = vmatpush.msra.mxu0 0.0
      %927 = vmatpush.msra.mxu0 0.0
      %928 = vmatpush.msra.mxu0 %v911
      %929 = vmatmul.f32.gmra.mxu0 %v887
      %v930 = vpop.f32.mrf.mxu0
      %v931 = vadd.f32 0.0, %v930
      %932 = vmatmul.f32.gmra.mxu0 %v890
      %v933 = vpop.f32.mrf.mxu0
      %v934 = vadd.f32 0.0, %v933
      %935 = vmatmul.f32.gmra.mxu0 %v893
      %v936 = vpop.f32.mrf.mxu0
      %v937 = vadd.f32 0.0, %v936
      %938 = vmatmul.f32.gmra.mxu0 %v896
      %v939 = vpop.f32.mrf.mxu0
      %v940 = vadd.f32 0.0, %v939
      %941 = vmatmul.f32.gmra.mxu0 %v899
      %v942 = vpop.f32.mrf.mxu0
      %v943 = vadd.f32 0.0, %v942
      %944 = vmatmul.f32.gmra.mxu0 %v902
      %v945 = vpop.f32.mrf.mxu0
      %v946 = vadd.f32 0.0, %v945
      %947 = vmatmul.f32.gmra.mxu0 %v905
      %v948 = vpop.f32.mrf.mxu0
      %v949 = vadd.f32 0.0, %v948
      %950 = vmatmul.f32.gmra.mxu0 %v908
      %v951 = vpop.f32.mrf.mxu0
      %v952 = vadd.f32 0.0, %v951
      %953 = vdwg.mxu0
      %v954 = vadd.f32 %v867, %v931
      %v955 = vadd.f32 %v868, %v934
      %v956 = vadd.f32 %v869, %v937
      %v957 = vadd.f32 %v870, %v940
      %v958 = vadd.f32 %v871, %v943
      %v959 = vadd.f32 %v872, %v946
      %v960 = vadd.f32 %v873, %v949
      %v961 = vadd.f32 %v874, %v952
      %v962 = vld [vmem:[%s875 + $0x1] sm:$0xff]
      %v963 = vld [vmem:[%s875 + $0x11] sm:$0xff]
      %v964 = vld [vmem:[%s875 + $0x21] sm:$0xff]
      %v965 = vld [vmem:[%s875 + $0x31] sm:$0xff]
      %v966 = vld [vmem:[%s875 + $0x41] sm:$0xff]
      %v967 = vld [vmem:[%s875 + $0x51] sm:$0xff]
      %v968 = vld [vmem:[%s875 + $0x61] sm:$0xff]
      %v969 = vld [vmem:[%s875 + $0x71] sm:$0xff]
      %s970 = scalar_lea.vmem %s1, 28
      %v971 = vld [vmem:[%s970] sm:$0xf]
      %v973 = vsel %vm344, %v962, 0
      %v976 = vsel %vm344, %v963, 0
      %v979 = vsel %vm344, %v964, 0
      %v982 = vsel %vm344, %v965, 0
      %v985 = vsel %vm344, %v966, 0
      %v988 = vsel %vm344, %v967, 0
      %v991 = vsel %vm344, %v968, 0
      %v994 = vsel %vm344, %v969, 0
      %v997 = vsel %vm418, %v971, 0
      %999 = vmatpush.msra.mxu0 0.0
      %1000 = vmatpush.msra.mxu0 0.0
      %1001 = vmatpush.msra.mxu0 0.0
      %1002 = vmatpush.msra.mxu0 0.0
      %1003 = vmatpush.msra.mxu0 0.0
      %1004 = vmatpush.msra.mxu0 0.0
      %1005 = vmatpush.msra.mxu0 0.0
      %1006 = vmatpush.msra.mxu0 0.0
      %1007 = vmatpush.msra.mxu0 0.0
      %1008 = vmatpush.msra.mxu0 0.0
      %1009 = vmatpush.msra.mxu0 0.0
      %1010 = vmatpush.msra.mxu0 0.0
      %1011 = vmatpush.msra.mxu0 0.0
      %1012 = vmatpush.msra.mxu0 0.0
      %1013 = vmatpush.msra.mxu0 0.0
      %1014 = vmatpush.msra.mxu0 %v997
      %1015 = vmatmul.f32.gmra.mxu0 %v973
      %v1016 = vpop.f32.mrf.mxu0
      %v1017 = vadd.f32 0.0, %v1016
      %1018 = vmatmul.f32.gmra.mxu0 %v976
      %v1019 = vpop.f32.mrf.mxu0
      %v1020 = vadd.f32 0.0, %v1019
      %1021 = vmatmul.f32.gmra.mxu0 %v979
      %v1022 = vpop.f32.mrf.mxu0
      %v1023 = vadd.f32 0.0, %v1022
      %1024 = vmatmul.f32.gmra.mxu0 %v982
      %v1025 = vpop.f32.mrf.mxu0
      %v1026 = vadd.f32 0.0, %v1025
      %1027 = vmatmul.f32.gmra.mxu0 %v985
      %v1028 = vpop.f32.mrf.mxu0
      %v1029 = vadd.f32 0.0, %v1028
      %1030 = vmatmul.f32.gmra.mxu0 %v988
      %v1031 = vpop.f32.mrf.mxu0
      %v1032 = vadd.f32 0.0, %v1031
      %1033 = vmatmul.f32.gmra.mxu0 %v991
      %v1034 = vpop.f32.mrf.mxu0
      %v1035 = vadd.f32 0.0, %v1034
      %1036 = vmatmul.f32.gmra.mxu0 %v994
      %v1037 = vpop.f32.mrf.mxu0
      %v1038 = vadd.f32 0.0, %v1037
      %1039 = vdwg.mxu0
      %v1040 = vadd.f32 %v954, %v1017
      %v1041 = vadd.f32 %v955, %v1020
      %v1042 = vadd.f32 %v956, %v1023
      %v1043 = vadd.f32 %v957, %v1026
      %v1044 = vadd.f32 %v958, %v1029
      %v1045 = vadd.f32 %v959, %v1032
      %v1046 = vadd.f32 %v960, %v1035
      %v1047 = vadd.f32 %v961, %v1038
      %v1048 = vld [vmem:[%s875 + $0x2] sm:$0xff]
      %v1049 = vld [vmem:[%s875 + $0x12] sm:$0xff]
      %v1050 = vld [vmem:[%s875 + $0x22] sm:$0xff]
      %v1051 = vld [vmem:[%s875 + $0x32] sm:$0xff]
      %v1052 = vld [vmem:[%s875 + $0x42] sm:$0xff]
      %v1053 = vld [vmem:[%s875 + $0x52] sm:$0xff]
      %v1054 = vld [vmem:[%s875 + $0x62] sm:$0xff]
      %v1055 = vld [vmem:[%s875 + $0x72] sm:$0xff]
      %s1056 = scalar_lea.vmem %s1, 32
      %v1057 = vld [vmem:[%s1056] sm:$0xf]
      %v1059 = vsel %vm344, %v1048, 0
      %v1062 = vsel %vm344, %v1049, 0
      %v1065 = vsel %vm344, %v1050, 0
      %v1068 = vsel %vm344, %v1051, 0
      %v1071 = vsel %vm344, %v1052, 0
      %v1074 = vsel %vm344, %v1053, 0
      %v1077 = vsel %vm344, %v1054, 0
      %v1080 = vsel %vm344, %v1055, 0
      %v1083 = vsel %vm418, %v1057, 0
      %1085 = vmatpush.msra.mxu0 0.0
      %1086 = vmatpush.msra.mxu0 0.0
      %1087 = vmatpush.msra.mxu0 0.0
      %1088 = vmatpush.msra.mxu0 0.0
      %1089 = vmatpush.msra.mxu0 0.0
      %1090 = vmatpush.msra.mxu0 0.0
      %1091 = vmatpush.msra.mxu0 0.0
      %1092 = vmatpush.msra.mxu0 0.0
      %1093 = vmatpush.msra.mxu0 0.0
      %1094 = vmatpush.msra.mxu0 0.0
      %1095 = vmatpush.msra.mxu0 0.0
      %1096 = vmatpush.msra.mxu0 0.0
      %1097 = vmatpush.msra.mxu0 0.0
      %1098 = vmatpush.msra.mxu0 0.0
      %1099 = vmatpush.msra.mxu0 0.0
      %1100 = vmatpush.msra.mxu0 %v1083
      %1101 = vmatmul.f32.gmra.mxu0 %v1059
      %v1102 = vpop.f32.mrf.mxu0
      %v1103 = vadd.f32 0.0, %v1102
      %1104 = vmatmul.f32.gmra.mxu0 %v1062
      %v1105 = vpop.f32.mrf.mxu0
      %v1106 = vadd.f32 0.0, %v1105
      %1107 = vmatmul.f32.gmra.mxu0 %v1065
      %v1108 = vpop.f32.mrf.mxu0
      %v1109 = vadd.f32 0.0, %v1108
      %1110 = vmatmul.f32.gmra.mxu0 %v1068
      %v1111 = vpop.f32.mrf.mxu0
      %v1112 = vadd.f32 0.0, %v1111
      %1113 = vmatmul.f32.gmra.mxu0 %v1071
      %v1114 = vpop.f32.mrf.mxu0
      %v1115 = vadd.f32 0.0, %v1114
      %1116 = vmatmul.f32.gmra.mxu0 %v1074
      %v1117 = vpop.f32.mrf.mxu0
      %v1118 = vadd.f32 0.0, %v1117
      %1119 = vmatmul.f32.gmra.mxu0 %v1077
      %v1120 = vpop.f32.mrf.mxu0
      %v1121 = vadd.f32 0.0, %v1120
      %1122 = vmatmul.f32.gmra.mxu0 %v1080
      %v1123 = vpop.f32.mrf.mxu0
      %v1124 = vadd.f32 0.0, %v1123
      %1125 = vdwg.mxu0
      %v1126 = vadd.f32 %v1040, %v1103
      %v1127 = vadd.f32 %v1041, %v1106
      %v1128 = vadd.f32 %v1042, %v1109
      %v1129 = vadd.f32 %v1043, %v1112
      %v1130 = vadd.f32 %v1044, %v1115
      %v1131 = vadd.f32 %v1045, %v1118
      %v1132 = vadd.f32 %v1046, %v1121
      %v1133 = vadd.f32 %v1047, %v1124
      %v1134 = vld [vmem:[%s2] sm:$0x1]
      %v1136 = vperm.slane %v1134, 0
      %v1138 = vmul.f32 %v1126, %v1136
      %v1139 = vmul.f32 %v1127, %v1136
      %v1140 = vmul.f32 %v1128, %v1136
      %v1141 = vmul.f32 %v1129, %v1136
      %v1142 = vmul.f32 %v1130, %v1136
      %v1143 = vmul.f32 %v1131, %v1136
      %v1144 = vmul.f32 %v1132, %v1136
      %v1145 = vmul.f32 %v1133, %v1136
      %v1146 = vld [vmem:[%s3] sm:$0x1]
      %v1148 = vperm.slane %v1146, 0
      %v1150 = vadd.f32 %v1138, %v1148
      %v1151 = vadd.f32 %v1139, %v1148
      %v1152 = vadd.f32 %v1140, %v1148
      %v1153 = vadd.f32 %v1141, %v1148
      %v1154 = vadd.f32 %v1142, %v1148
      %v1155 = vadd.f32 %v1143, %v1148
      %v1156 = vadd.f32 %v1144, %v1148
      %v1157 = vadd.f32 %v1145, %v1148
      %v1158 = vmax.f32 %v1150, 0.0
      %v1159 = vmax.f32 %v1151, 0.0
      %v1160 = vmax.f32 %v1152, 0.0
      %v1161 = vmax.f32 %v1153, 0.0
      %v1162 = vmax.f32 %v1154, 0.0
      %v1163 = vmax.f32 %v1155, 0.0
      %v1164 = vmax.f32 %v1156, 0.0
      %v1165 = vmax.f32 %v1157, 0.0
      %vm1166 = vcmask 64512
      %1167 = vst.msk [vmem:[#allocation3] sm:$0xff] %vm1166, 0.0
      %vm1168 = vcmask 58368
      %1169 = vst.msk [vmem:[#allocation3 + $0x8] sm:$0x3] %vm1168, 0.0
      %1170 = vst.msk [vmem:[#allocation3 + $0x10] sm:$0xff] %vm1166, 0.0
      %1171 = vst.msk [vmem:[#allocation3 + $0x18] sm:$0x3] %vm1168, 0.0
      %1172 = vst.msk [vmem:[#allocation3 + $0x20] sm:$0xff] %vm1166, 0.0
      %1173 = vst.msk [vmem:[#allocation3 + $0x28] sm:$0x3] %vm1168, 0.0
      %1174 = vst.msk [vmem:[#allocation3 + $0x30] sm:$0xff] %vm1166, 0.0
      %1175 = vst.msk [vmem:[#allocation3 + $0x38] sm:$0x3] %vm1168, 0.0
      %1176 = vst.msk [vmem:[#allocation3 + $0x40] sm:$0xff] %vm1166, 0.0
      %1177 = vst.msk [vmem:[#allocation3 + $0x48] sm:$0x3] %vm1168, 0.0
      %1178 = vst.msk [vmem:[#allocation3 + $0x50] sm:$0xff] %vm1166, 0.0
      %1179 = vst.msk [vmem:[#allocation3 + $0x58] sm:$0x3] %vm1168, 0.0
      %1180 = vst.msk [vmem:[#allocation3 + $0x60] sm:$0xff] %vm1166, 0.0
      %1181 = vst.msk [vmem:[#allocation3 + $0x68] sm:$0x3] %vm1168, 0.0
      %1182 = vst.msk [vmem:[#allocation3 + $0x70] sm:$0xff] %vm1166, 0.0
      %1183 = vst.msk [vmem:[#allocation3 + $0x78] sm:$0x3] %vm1168, 0.0
      %1184 = vst.msk [vmem:[#allocation3 + $0x80] sm:$0xff] %vm1166, 0.0
      %1185 = vst.msk [vmem:[#allocation3 + $0x88] sm:$0x3] %vm1168, 0.0
      %1186 = vst.msk [vmem:[#allocation3 + $0x90] sm:$0xff] %vm1166, 0.0
      %1187 = vst.msk [vmem:[#allocation3 + $0x98] sm:$0x3] %vm1168, 0.0
      %s1188 = scalar_lea.vmem [#allocation3], 16
      %1189 = vst.msk [vmem:[%s1188 + $0x1] sm:$0xff] %vm1166, %v1158
      %1190 = vst.msk [vmem:[%s1188 + $0x11] sm:$0xff] %vm1166, %v1159
      %1191 = vst.msk [vmem:[%s1188 + $0x21] sm:$0xff] %vm1166, %v1160
      %1192 = vst.msk [vmem:[%s1188 + $0x31] sm:$0xff] %vm1166, %v1161
      %1193 = vst.msk [vmem:[%s1188 + $0x41] sm:$0xff] %vm1166, %v1162
      %1194 = vst.msk [vmem:[%s1188 + $0x51] sm:$0xff] %vm1166, %v1163
      %1195 = vst.msk [vmem:[%s1188 + $0x61] sm:$0xff] %vm1166, %v1164
      %1196 = vst.msk [vmem:[%s1188 + $0x71] sm:$0xff] %vm1166, %v1165
      %v1197 = vld [vmem:[#allocation3] sm:$0xff]
      %v1198 = vld [vmem:[#allocation3 + $0x10] sm:$0xff]
      %v1199 = vld [vmem:[#allocation3 + $0x20] sm:$0xff]
      %v1200 = vld [vmem:[#allocation3 + $0x30] sm:$0xff]
      %v1201 = vld [vmem:[#allocation3 + $0x40] sm:$0xff]
      %v1202 = vld [vmem:[#allocation3 + $0x50] sm:$0xff]
      %v1203 = vld [vmem:[#allocation3 + $0x60] sm:$0xff]
      %v1204 = vld [vmem:[#allocation3 + $0x70] sm:$0xff]
      %v1205 = vld [vmem:[%s4] sm:$0xff]
      %v1206 = vld [vmem:[#allocation3 + $0x1] sm:$0xff]
      %v1207 = vld [vmem:[#allocation3 + $0x11] sm:$0xff]
      %v1208 = vld [vmem:[#allocation3 + $0x21] sm:$0xff]
      %v1209 = vld [vmem:[#allocation3 + $0x31] sm:$0xff]
      %v1210 = vld [vmem:[#allocation3 + $0x41] sm:$0xff]
      %v1211 = vld [vmem:[#allocation3 + $0x51] sm:$0xff]
      %v1212 = vld [vmem:[#allocation3 + $0x61] sm:$0xff]
      %v1213 = vld [vmem:[#allocation3 + $0x71] sm:$0xff]
      %s1214 = scalar_lea.vmem %s4, 8
      %v1215 = vld [vmem:[%s1214] sm:$0xff]
      %v1217 = vsel %vm1166, %v1206, 0
      %v1220 = vsel %vm1166, %v1207, 0
      %v1223 = vsel %vm1166, %v1208, 0
      %v1226 = vsel %vm1166, %v1209, 0
      %v1229 = vsel %vm1166, %v1210, 0
      %v1232 = vsel %vm1166, %v1211, 0
      %v1235 = vsel %vm1166, %v1212, 0
      %v1238 = vsel %vm1166, %v1213, 0
      %1240 = vmatpush.msra.mxu0 0.0
      %1241 = vmatpush.msra.mxu0 0.0
      %1242 = vmatpush.msra.mxu0 0.0
      %1243 = vmatpush.msra.mxu0 0.0
      %1244 = vmatpush.msra.mxu0 0.0
      %1245 = vmatpush.msra.mxu0 0.0
      %1246 = vmatpush.msra.mxu0 0.0
      %1247 = vmatpush.msra.mxu0 0.0
      %1248 = vmatpush.msra.mxu0 0.0
      %1249 = vmatpush.msra.mxu0 0.0
      %1250 = vmatpush.msra.mxu0 0.0
      %1251 = vmatpush.msra.mxu0 0.0
      %1252 = vmatpush.msra.mxu0 0.0
      %1253 = vmatpush.msra.mxu0 0.0
      %1254 = vmatpush.msra.mxu0 0.0
      %1255 = vmatpush.msra.mxu0 %v1215
      %1256 = vmatmul.f32.gmra.mxu0 %v1217
      %v1257 = vpop.f32.mrf.mxu0
      %v1258 = vadd.f32 0.0, %v1257
      %1259 = vmatmul.f32.gmra.mxu0 %v1220
      %v1260 = vpop.f32.mrf.mxu0
      %v1261 = vadd.f32 0.0, %v1260
      %1262 = vmatmul.f32.gmra.mxu0 %v1223
      %v1263 = vpop.f32.mrf.mxu0
      %v1264 = vadd.f32 0.0, %v1263
      %1265 = vmatmul.f32.gmra.mxu0 %v1226
      %v1266 = vpop.f32.mrf.mxu0
      %v1267 = vadd.f32 0.0, %v1266
      %1268 = vmatmul.f32.gmra.mxu0 %v1229
      %v1269 = vpop.f32.mrf.mxu0
      %v1270 = vadd.f32 0.0, %v1269
      %1271 = vmatmul.f32.gmra.mxu0 %v1232
      %v1272 = vpop.f32.mrf.mxu0
      %v1273 = vadd.f32 0.0, %v1272
      %1274 = vmatmul.f32.gmra.mxu0 %v1235
      %v1275 = vpop.f32.mrf.mxu0
      %v1276 = vadd.f32 0.0, %v1275
      %1277 = vmatmul.f32.gmra.mxu0 %v1238
      %v1278 = vpop.f32.mrf.mxu0
      %v1279 = vadd.f32 0.0, %v1278
      %1280 = vdwg.mxu0
      %v1282 = vsel %vm1166, %v1197, 0
      %v1285 = vsel %vm1166, %v1198, 0
      %v1288 = vsel %vm1166, %v1199, 0
      %v1291 = vsel %vm1166, %v1200, 0
      %v1294 = vsel %vm1166, %v1201, 0
      %v1297 = vsel %vm1166, %v1202, 0
      %v1300 = vsel %vm1166, %v1203, 0
      %v1303 = vsel %vm1166, %v1204, 0
      %1305 = vmatpush.msra.mxu0 0.0
      %1306 = vmatpush.msra.mxu0 0.0
      %1307 = vmatpush.msra.mxu0 0.0
      %1308 = vmatpush.msra.mxu0 0.0
      %1309 = vmatpush.msra.mxu0 0.0
      %1310 = vmatpush.msra.mxu0 0.0
      %1311 = vmatpush.msra.mxu0 0.0
      %1312 = vmatpush.msra.mxu0 0.0
      %1313 = vmatpush.msra.mxu0 0.0
      %1314 = vmatpush.msra.mxu0 0.0
      %1315 = vmatpush.msra.mxu0 0.0
      %1316 = vmatpush.msra.mxu0 0.0
      %1317 = vmatpush.msra.mxu0 0.0
      %1318 = vmatpush.msra.mxu0 0.0
      %1319 = vmatpush.msra.mxu0 0.0
      %1320 = vmatpush.msra.mxu0 %v1205
      %1321 = vmatmul.f32.gmra.mxu0 %v1282
      %v1322 = vpop.f32.mrf.mxu0
      %v1323 = vadd.f32 %v1258, %v1322
      %1324 = vmatmul.f32.gmra.mxu0 %v1285
      %v1325 = vpop.f32.mrf.mxu0
      %v1326 = vadd.f32 %v1261, %v1325
      %1327 = vmatmul.f32.gmra.mxu0 %v1288
      %v1328 = vpop.f32.mrf.mxu0
      %v1329 = vadd.f32 %v1264, %v1328
      %1330 = vmatmul.f32.gmra.mxu0 %v1291
      %v1331 = vpop.f32.mrf.mxu0
      %v1332 = vadd.f32 %v1267, %v1331
      %1333 = vmatmul.f32.gmra.mxu0 %v1294
      %v1334 = vpop.f32.mrf.mxu0
      %v1335 = vadd.f32 %v1270, %v1334
      %1336 = vmatmul.f32.gmra.mxu0 %v1297
      %v1337 = vpop.f32.mrf.mxu0
      %v1338 = vadd.f32 %v1273, %v1337
      %1339 = vmatmul.f32.gmra.mxu0 %v1300
      %v1340 = vpop.f32.mrf.mxu0
      %v1341 = vadd.f32 %v1276, %v1340
      %1342 = vmatmul.f32.gmra.mxu0 %v1303
      %v1343 = vpop.f32.mrf.mxu0
      %v1344 = vadd.f32 %v1279, %v1343
      %1345 = vdwg.mxu0
      %v1346 = vld [vmem:[#allocation3 + $0x2] sm:$0xff]
      %v1347 = vld [vmem:[#allocation3 + $0x12] sm:$0xff]
      %v1348 = vld [vmem:[#allocation3 + $0x22] sm:$0xff]
      %v1349 = vld [vmem:[#allocation3 + $0x32] sm:$0xff]
      %v1350 = vld [vmem:[#allocation3 + $0x42] sm:$0xff]
      %v1351 = vld [vmem:[#allocation3 + $0x52] sm:$0xff]
      %v1352 = vld [vmem:[#allocation3 + $0x62] sm:$0xff]
      %v1353 = vld [vmem:[#allocation3 + $0x72] sm:$0xff]
      %s1354 = scalar_lea.vmem %s4, 16
      %v1355 = vld [vmem:[%s1354] sm:$0xff]
      %v1357 = vsel %vm1166, %v1346, 0
      %v1360 = vsel %vm1166, %v1347, 0
      %v1363 = vsel %vm1166, %v1348, 0
      %v1366 = vsel %vm1166, %v1349, 0
      %v1369 = vsel %vm1166, %v1350, 0
      %v1372 = vsel %vm1166, %v1351, 0
      %v1375 = vsel %vm1166, %v1352, 0
      %v1378 = vsel %vm1166, %v1353, 0
      %1380 = vmatpush.msra.mxu0 0.0
      %1381 = vmatpush.msra.mxu0 0.0
      %1382 = vmatpush.msra.mxu0 0.0
      %1383 = vmatpush.msra.mxu0 0.0
      %1384 = vmatpush.msra.mxu0 0.0
      %1385 = vmatpush.msra.mxu0 0.0
      %1386 = vmatpush.msra.mxu0 0.0
      %1387 = vmatpush.msra.mxu0 0.0
      %1388 = vmatpush.msra.mxu0 0.0
      %1389 = vmatpush.msra.mxu0 0.0
      %1390 = vmatpush.msra.mxu0 0.0
      %1391 = vmatpush.msra.mxu0 0.0
      %1392 = vmatpush.msra.mxu0 0.0
      %1393 = vmatpush.msra.mxu0 0.0
      %1394 = vmatpush.msra.mxu0 0.0
      %1395 = vmatpush.msra.mxu0 %v1355
      %1396 = vmatmul.f32.gmra.mxu0 %v1357
      %v1397 = vpop.f32.mrf.mxu0
      %v1398 = vadd.f32 0.0, %v1397
      %1399 = vmatmul.f32.gmra.mxu0 %v1360
      %v1400 = vpop.f32.mrf.mxu0
      %v1401 = vadd.f32 0.0, %v1400
      %1402 = vmatmul.f32.gmra.mxu0 %v1363
      %v1403 = vpop.f32.mrf.mxu0
      %v1404 = vadd.f32 0.0, %v1403
      %1405 = vmatmul.f32.gmra.mxu0 %v1366
      %v1406 = vpop.f32.mrf.mxu0
      %v1407 = vadd.f32 0.0, %v1406
      %1408 = vmatmul.f32.gmra.mxu0 %v1369
      %v1409 = vpop.f32.mrf.mxu0
      %v1410 = vadd.f32 0.0, %v1409
      %1411 = vmatmul.f32.gmra.mxu0 %v1372
      %v1412 = vpop.f32.mrf.mxu0
      %v1413 = vadd.f32 0.0, %v1412
      %1414 = vmatmul.f32.gmra.mxu0 %v1375
      %v1415 = vpop.f32.mrf.mxu0
      %v1416 = vadd.f32 0.0, %v1415
      %1417 = vmatmul.f32.gmra.mxu0 %v1378
      %v1418 = vpop.f32.mrf.mxu0
      %v1419 = vadd.f32 0.0, %v1418
      %1420 = vdwg.mxu0
      %v1421 = vadd.f32 %v1323, %v1398
      %v1422 = vadd.f32 %v1326, %v1401
      %v1423 = vadd.f32 %v1329, %v1404
      %v1424 = vadd.f32 %v1332, %v1407
      %v1425 = vadd.f32 %v1335, %v1410
      %v1426 = vadd.f32 %v1338, %v1413
      %v1427 = vadd.f32 %v1341, %v1416
      %v1428 = vadd.f32 %v1344, %v1419
      %v1429 = vld [vmem:[%s1188] sm:$0xff]
      %v1430 = vld [vmem:[%s1188 + $0x10] sm:$0xff]
      %v1431 = vld [vmem:[%s1188 + $0x20] sm:$0xff]
      %v1432 = vld [vmem:[%s1188 + $0x30] sm:$0xff]
      %v1433 = vld [vmem:[%s1188 + $0x40] sm:$0xff]
      %v1434 = vld [vmem:[%s1188 + $0x50] sm:$0xff]
      %v1435 = vld [vmem:[%s1188 + $0x60] sm:$0xff]
      %v1436 = vld [vmem:[%s1188 + $0x70] sm:$0xff]
      %s1437 = scalar_lea.vmem %s4, 24
      %v1438 = vld [vmem:[%s1437] sm:$0xff]
      %v1440 = vsel %vm1166, %v1429, 0
      %v1443 = vsel %vm1166, %v1430, 0
      %v1446 = vsel %vm1166, %v1431, 0
      %v1449 = vsel %vm1166, %v1432, 0
      %v1452 = vsel %vm1166, %v1433, 0
      %v1455 = vsel %vm1166, %v1434, 0
      %v1458 = vsel %vm1166, %v1435, 0
      %v1461 = vsel %vm1166, %v1436, 0
      %1463 = vmatpush.msra.mxu0 0.0
      %1464 = vmatpush.msra.mxu0 0.0
      %1465 = vmatpush.msra.mxu0 0.0
      %1466 = vmatpush.msra.mxu0 0.0
      %1467 = vmatpush.msra.mxu0 0.0
      %1468 = vmatpush.msra.mxu0 0.0
      %1469 = vmatpush.msra.mxu0 0.0
      %1470 = vmatpush.msra.mxu0 0.0
      %1471 = vmatpush.msra.mxu0 0.0
      %1472 = vmatpush.msra.mxu0 0.0
      %1473 = vmatpush.msra.mxu0 0.0
      %1474 = vmatpush.msra.mxu0 0.0
      %1475 = vmatpush.msra.mxu0 0.0
      %1476 = vmatpush.msra.mxu0 0.0
      %1477 = vmatpush.msra.mxu0 0.0
      %1478 = vmatpush.msra.mxu0 %v1438
      %1479 = vmatmul.f32.gmra.mxu0 %v1440
      %v1480 = vpop.f32.mrf.mxu0
      %v1481 = vadd.f32 0.0, %v1480
      %1482 = vmatmul.f32.gmra.mxu0 %v1443
      %v1483 = vpop.f32.mrf.mxu0
      %v1484 = vadd.f32 0.0, %v1483
      %1485 = vmatmul.f32.gmra.mxu0 %v1446
      %v1486 = vpop.f32.mrf.mxu0
      %v1487 = vadd.f32 0.0, %v1486
      %1488 = vmatmul.f32.gmra.mxu0 %v1449
      %v1489 = vpop.f32.mrf.mxu0
      %v1490 = vadd.f32 0.0, %v1489
      %1491 = vmatmul.f32.gmra.mxu0 %v1452
      %v1492 = vpop.f32.mrf.mxu0
      %v1493 = vadd.f32 0.0, %v1492
      %1494 = vmatmul.f32.gmra.mxu0 %v1455
      %v1495 = vpop.f32.mrf.mxu0
      %v1496 = vadd.f32 0.0, %v1495
      %1497 = vmatmul.f32.gmra.mxu0 %v1458
      %v1498 = vpop.f32.mrf.mxu0
      %v1499 = vadd.f32 0.0, %v1498
      %1500 = vmatmul.f32.gmra.mxu0 %v1461
      %v1501 = vpop.f32.mrf.mxu0
      %v1502 = vadd.f32 0.0, %v1501
      %1503 = vdwg.mxu0
      %v1504 = vadd.f32 %v1421, %v1481
      %v1505 = vadd.f32 %v1422, %v1484
      %v1506 = vadd.f32 %v1423, %v1487
      %v1507 = vadd.f32 %v1424, %v1490
      %v1508 = vadd.f32 %v1425, %v1493
      %v1509 = vadd.f32 %v1426, %v1496
      %v1510 = vadd.f32 %v1427, %v1499
      %v1511 = vadd.f32 %v1428, %v1502
      %v1512 = vld [vmem:[%s1188 + $0x1] sm:$0xff]
      %v1513 = vld [vmem:[%s1188 + $0x11] sm:$0xff]
      %v1514 = vld [vmem:[%s1188 + $0x21] sm:$0xff]
      %v1515 = vld [vmem:[%s1188 + $0x31] sm:$0xff]
      %v1516 = vld [vmem:[%s1188 + $0x41] sm:$0xff]
      %v1517 = vld [vmem:[%s1188 + $0x51] sm:$0xff]
      %v1518 = vld [vmem:[%s1188 + $0x61] sm:$0xff]
      %v1519 = vld [vmem:[%s1188 + $0x71] sm:$0xff]
      %s1520 = scalar_lea.vmem %s4, 32
      %v1521 = vld [vmem:[%s1520] sm:$0xff]
      %v1523 = vsel %vm1166, %v1512, 0
      %v1526 = vsel %vm1166, %v1513, 0
      %v1529 = vsel %vm1166, %v1514, 0
      %v1532 = vsel %vm1166, %v1515, 0
      %v1535 = vsel %vm1166, %v1516, 0
      %v1538 = vsel %vm1166, %v1517, 0
      %v1541 = vsel %vm1166, %v1518, 0
      %v1544 = vsel %vm1166, %v1519, 0
      %1546 = vmatpush.msra.mxu0 0.0
      %1547 = vmatpush.msra.mxu0 0.0
      %1548 = vmatpush.msra.mxu0 0.0
      %1549 = vmatpush.msra.mxu0 0.0
      %1550 = vmatpush.msra.mxu0 0.0
      %1551 = vmatpush.msra.mxu0 0.0
      %1552 = vmatpush.msra.mxu0 0.0
      %1553 = vmatpush.msra.mxu0 0.0
      %1554 = vmatpush.msra.mxu0 0.0
      %1555 = vmatpush.msra.mxu0 0.0
      %1556 = vmatpush.msra.mxu0 0.0
      %1557 = vmatpush.msra.mxu0 0.0
      %1558 = vmatpush.msra.mxu0 0.0
      %1559 = vmatpush.msra.mxu0 0.0
      %1560 = vmatpush.msra.mxu0 0.0
      %1561 = vmatpush.msra.mxu0 %v1521
      %1562 = vmatmul.f32.gmra.mxu0 %v1523
      %v1563 = vpop.f32.mrf.mxu0
      %v1564 = vadd.f32 0.0, %v1563
      %1565 = vmatmul.f32.gmra.mxu0 %v1526
      %v1566 = vpop.f32.mrf.mxu0
      %v1567 = vadd.f32 0.0, %v1566
      %1568 = vmatmul.f32.gmra.mxu0 %v1529
      %v1569 = vpop.f32.mrf.mxu0
      %v1570 = vadd.f32 0.0, %v1569
      %1571 = vmatmul.f32.gmra.mxu0 %v1532
      %v1572 = vpop.f32.mrf.mxu0
      %v1573 = vadd.f32 0.0, %v1572
      %1574 = vmatmul.f32.gmra.mxu0 %v1535
      %v1575 = vpop.f32.mrf.mxu0
      %v1576 = vadd.f32 0.0, %v1575
      %1577 = vmatmul.f32.gmra.mxu0 %v1538
      %v1578 = vpop.f32.mrf.mxu0
      %v1579 = vadd.f32 0.0, %v1578
      %1580 = vmatmul.f32.gmra.mxu0 %v1541
      %v1581 = vpop.f32.mrf.mxu0
      %v1582 = vadd.f32 0.0, %v1581
      %1583 = vmatmul.f32.gmra.mxu0 %v1544
      %v1584 = vpop.f32.mrf.mxu0
      %v1585 = vadd.f32 0.0, %v1584
      %1586 = vdwg.mxu0
      %v1587 = vadd.f32 %v1504, %v1564
      %v1588 = vadd.f32 %v1505, %v1567
      %v1589 = vadd.f32 %v1506, %v1570
      %v1590 = vadd.f32 %v1507, %v1573
      %v1591 = vadd.f32 %v1508, %v1576
      %v1592 = vadd.f32 %v1509, %v1579
      %v1593 = vadd.f32 %v1510, %v1582
      %v1594 = vadd.f32 %v1511, %v1585
      %v1595 = vld [vmem:[%s1188 + $0x2] sm:$0xff]
      %v1596 = vld [vmem:[%s1188 + $0x12] sm:$0xff]
      %v1597 = vld [vmem:[%s1188 + $0x22] sm:$0xff]
      %v1598 = vld [vmem:[%s1188 + $0x32] sm:$0xff]
      %v1599 = vld [vmem:[%s1188 + $0x42] sm:$0xff]
      %v1600 = vld [vmem:[%s1188 + $0x52] sm:$0xff]
      %v1601 = vld [vmem:[%s1188 + $0x62] sm:$0xff]
      %v1602 = vld [vmem:[%s1188 + $0x72] sm:$0xff]
      %s1603 = scalar_lea.vmem %s4, 40
      %v1604 = vld [vmem:[%s1603] sm:$0xff]
      %v1606 = vsel %vm1166, %v1595, 0
      %v1609 = vsel %vm1166, %v1596, 0
      %v1612 = vsel %vm1166, %v1597, 0
      %v1615 = vsel %vm1166, %v1598, 0
      %v1618 = vsel %vm1166, %v1599, 0
      %v1621 = vsel %vm1166, %v1600, 0
      %v1624 = vsel %vm1166, %v1601, 0
      %v1627 = vsel %vm1166, %v1602, 0
      %1629 = vmatpush.msra.mxu0 0.0
      %1630 = vmatpush.msra.mxu0 0.0
      %1631 = vmatpush.msra.mxu0 0.0
      %1632 = vmatpush.msra.mxu0 0.0
      %1633 = vmatpush.msra.mxu0 0.0
      %1634 = vmatpush.msra.mxu0 0.0
      %1635 = vmatpush.msra.mxu0 0.0
      %1636 = vmatpush.msra.mxu0 0.0
      %1637 = vmatpush.msra.mxu0 0.0
      %1638 = vmatpush.msra.mxu0 0.0
      %1639 = vmatpush.msra.mxu0 0.0
      %1640 = vmatpush.msra.mxu0 0.0
      %1641 = vmatpush.msra.mxu0 0.0
      %1642 = vmatpush.msra.mxu0 0.0
      %1643 = vmatpush.msra.mxu0 0.0
      %1644 = vmatpush.msra.mxu0 %v1604
      %1645 = vmatmul.f32.gmra.mxu0 %v1606
      %v1646 = vpop.f32.mrf.mxu0
      %v1647 = vadd.f32 0.0, %v1646
      %1648 = vmatmul.f32.gmra.mxu0 %v1609
      %v1649 = vpop.f32.mrf.mxu0
      %v1650 = vadd.f32 0.0, %v1649
      %1651 = vmatmul.f32.gmra.mxu0 %v1612
      %v1652 = vpop.f32.mrf.mxu0
      %v1653 = vadd.f32 0.0, %v1652
      %1654 = vmatmul.f32.gmra.mxu0 %v1615
      %v1655 = vpop.f32.mrf.mxu0
      %v1656 = vadd.f32 0.0, %v1655
      %1657 = vmatmul.f32.gmra.mxu0 %v1618
      %v1658 = vpop.f32.mrf.mxu0
      %v1659 = vadd.f32 0.0, %v1658
      %1660 = vmatmul.f32.gmra.mxu0 %v1621
      %v1661 = vpop.f32.mrf.mxu0
      %v1662 = vadd.f32 0.0, %v1661
      %1663 = vmatmul.f32.gmra.mxu0 %v1624
      %v1664 = vpop.f32.mrf.mxu0
      %v1665 = vadd.f32 0.0, %v1664
      %1666 = vmatmul.f32.gmra.mxu0 %v1627
      %v1667 = vpop.f32.mrf.mxu0
      %v1668 = vadd.f32 0.0, %v1667
      %1669 = vdwg.mxu0
      %v1670 = vadd.f32 %v1587, %v1647
      %v1671 = vadd.f32 %v1588, %v1650
      %v1672 = vadd.f32 %v1589, %v1653
      %v1673 = vadd.f32 %v1590, %v1656
      %v1674 = vadd.f32 %v1591, %v1659
      %v1675 = vadd.f32 %v1592, %v1662
      %v1676 = vadd.f32 %v1593, %v1665
      %v1677 = vadd.f32 %v1594, %v1668
      %s1678 = scalar_lea.vmem [#allocation3], 32
      %v1679 = vld [vmem:[%s1678] sm:$0xff]
      %v1680 = vld [vmem:[%s1678 + $0x10] sm:$0xff]
      %v1681 = vld [vmem:[%s1678 + $0x20] sm:$0xff]
      %v1682 = vld [vmem:[%s1678 + $0x30] sm:$0xff]
      %v1683 = vld [vmem:[%s1678 + $0x40] sm:$0xff]
      %v1684 = vld [vmem:[%s1678 + $0x50] sm:$0xff]
      %v1685 = vld [vmem:[%s1678 + $0x60] sm:$0xff]
      %v1686 = vld [vmem:[%s1678 + $0x70] sm:$0xff]
      %s1687 = scalar_lea.vmem %s4, 48
      %v1688 = vld [vmem:[%s1687] sm:$0xff]
      %v1690 = vsel %vm1166, %v1679, 0
      %v1693 = vsel %vm1166, %v1680, 0
      %v1696 = vsel %vm1166, %v1681, 0
      %v1699 = vsel %vm1166, %v1682, 0
      %v1702 = vsel %vm1166, %v1683, 0
      %v1705 = vsel %vm1166, %v1684, 0
      %v1708 = vsel %vm1166, %v1685, 0
      %v1711 = vsel %vm1166, %v1686, 0
      %1713 = vmatpush.msra.mxu0 0.0
      %1714 = vmatpush.msra.mxu0 0.0
      %1715 = vmatpush.msra.mxu0 0.0
      %1716 = vmatpush.msra.mxu0 0.0
      %1717 = vmatpush.msra.mxu0 0.0
      %1718 = vmatpush.msra.mxu0 0.0
      %1719 = vmatpush.msra.mxu0 0.0
      %1720 = vmatpush.msra.mxu0 0.0
      %1721 = vmatpush.msra.mxu0 0.0
      %1722 = vmatpush.msra.mxu0 0.0
      %1723 = vmatpush.msra.mxu0 0.0
      %1724 = vmatpush.msra.mxu0 0.0
      %1725 = vmatpush.msra.mxu0 0.0
      %1726 = vmatpush.msra.mxu0 0.0
      %1727 = vmatpush.msra.mxu0 0.0
      %1728 = vmatpush.msra.mxu0 %v1688
      %1729 = vmatmul.f32.gmra.mxu0 %v1690
      %v1730 = vpop.f32.mrf.mxu0
      %v1731 = vadd.f32 0.0, %v1730
      %1732 = vmatmul.f32.gmra.mxu0 %v1693
      %v1733 = vpop.f32.mrf.mxu0
      %v1734 = vadd.f32 0.0, %v1733
      %1735 = vmatmul.f32.gmra.mxu0 %v1696
      %v1736 = vpop.f32.mrf.mxu0
      %v1737 = vadd.f32 0.0, %v1736
      %1738 = vmatmul.f32.gmra.mxu0 %v1699
      %v1739 = vpop.f32.mrf.mxu0
      %v1740 = vadd.f32 0.0, %v1739
      %1741 = vmatmul.f32.gmra.mxu0 %v1702
      %v1742 = vpop.f32.mrf.mxu0
      %v1743 = vadd.f32 0.0, %v1742
      %1744 = vmatmul.f32.gmra.mxu0 %v1705
      %v1745 = vpop.f32.mrf.mxu0
      %v1746 = vadd.f32 0.0, %v1745
      %1747 = vmatmul.f32.gmra.mxu0 %v1708
      %v1748 = vpop.f32.mrf.mxu0
      %v1749 = vadd.f32 0.0, %v1748
      %1750 = vmatmul.f32.gmra.mxu0 %v1711
      %v1751 = vpop.f32.mrf.mxu0
      %v1752 = vadd.f32 0.0, %v1751
      %1753 = vdwg.mxu0
      %v1754 = vadd.f32 %v1670, %v1731
      %v1755 = vadd.f32 %v1671, %v1734
      %v1756 = vadd.f32 %v1672, %v1737
      %v1757 = vadd.f32 %v1673, %v1740
      %v1758 = vadd.f32 %v1674, %v1743
      %v1759 = vadd.f32 %v1675, %v1746
      %v1760 = vadd.f32 %v1676, %v1749
      %v1761 = vadd.f32 %v1677, %v1752
      %v1762 = vld [vmem:[%s1678 + $0x1] sm:$0xff]
      %v1763 = vld [vmem:[%s1678 + $0x11] sm:$0xff]
      %v1764 = vld [vmem:[%s1678 + $0x21] sm:$0xff]
      %v1765 = vld [vmem:[%s1678 + $0x31] sm:$0xff]
      %v1766 = vld [vmem:[%s1678 + $0x41] sm:$0xff]
      %v1767 = vld [vmem:[%s1678 + $0x51] sm:$0xff]
      %v1768 = vld [vmem:[%s1678 + $0x61] sm:$0xff]
      %v1769 = vld [vmem:[%s1678 + $0x71] sm:$0xff]
      %s1770 = scalar_lea.vmem %s4, 56
      %v1771 = vld [vmem:[%s1770] sm:$0xff]
      %v1773 = vsel %vm1166, %v1762, 0
      %v1776 = vsel %vm1166, %v1763, 0
      %v1779 = vsel %vm1166, %v1764, 0
      %v1782 = vsel %vm1166, %v1765, 0
      %v1785 = vsel %vm1166, %v1766, 0
      %v1788 = vsel %vm1166, %v1767, 0
      %v1791 = vsel %vm1166, %v1768, 0
      %v1794 = vsel %vm1166, %v1769, 0
      %1796 = vmatpush.msra.mxu0 0.0
      %1797 = vmatpush.msra.mxu0 0.0
      %1798 = vmatpush.msra.mxu0 0.0
      %1799 = vmatpush.msra.mxu0 0.0
      %1800 = vmatpush.msra.mxu0 0.0
      %1801 = vmatpush.msra.mxu0 0.0
      %1802 = vmatpush.msra.mxu0 0.0
      %1803 = vmatpush.msra.mxu0 0.0
      %1804 = vmatpush.msra.mxu0 0.0
      %1805 = vmatpush.msra.mxu0 0.0
      %1806 = vmatpush.msra.mxu0 0.0
      %1807 = vmatpush.msra.mxu0 0.0
      %1808 = vmatpush.msra.mxu0 0.0
      %1809 = vmatpush.msra.mxu0 0.0
      %1810 = vmatpush.msra.mxu0 0.0
      %1811 = vmatpush.msra.mxu0 %v1771
      %1812 = vmatmul.f32.gmra.mxu0 %v1773
      %v1813 = vpop.f32.mrf.mxu0
      %v1814 = vadd.f32 0.0, %v1813
      %1815 = vmatmul.f32.gmra.mxu0 %v1776
      %v1816 = vpop.f32.mrf.mxu0
      %v1817 = vadd.f32 0.0, %v1816
      %1818 = vmatmul.f32.gmra.mxu0 %v1779
      %v1819 = vpop.f32.mrf.mxu0
      %v1820 = vadd.f32 0.0, %v1819
      %1821 = vmatmul.f32.gmra.mxu0 %v1782
      %v1822 = vpop.f32.mrf.mxu0
      %v1823 = vadd.f32 0.0, %v1822
      %1824 = vmatmul.f32.gmra.mxu0 %v1785
      %v1825 = vpop.f32.mrf.mxu0
      %v1826 = vadd.f32 0.0, %v1825
      %1827 = vmatmul.f32.gmra.mxu0 %v1788
      %v1828 = vpop.f32.mrf.mxu0
      %v1829 = vadd.f32 0.0, %v1828
      %1830 = vmatmul.f32.gmra.mxu0 %v1791
      %v1831 = vpop.f32.mrf.mxu0
      %v1832 = vadd.f32 0.0, %v1831
      %1833 = vmatmul.f32.gmra.mxu0 %v1794
      %v1834 = vpop.f32.mrf.mxu0
      %v1835 = vadd.f32 0.0, %v1834
      %1836 = vdwg.mxu0
      %v1837 = vadd.f32 %v1754, %v1814
      %v1838 = vadd.f32 %v1755, %v1817
      %v1839 = vadd.f32 %v1756, %v1820
      %v1840 = vadd.f32 %v1757, %v1823
      %v1841 = vadd.f32 %v1758, %v1826
      %v1842 = vadd.f32 %v1759, %v1829
      %v1843 = vadd.f32 %v1760, %v1832
      %v1844 = vadd.f32 %v1761, %v1835
      %v1845 = vld [vmem:[%s1678 + $0x2] sm:$0xff]
      %v1846 = vld [vmem:[%s1678 + $0x12] sm:$0xff]
      %v1847 = vld [vmem:[%s1678 + $0x22] sm:$0xff]
      %v1848 = vld [vmem:[%s1678 + $0x32] sm:$0xff]
      %v1849 = vld [vmem:[%s1678 + $0x42] sm:$0xff]
      %v1850 = vld [vmem:[%s1678 + $0x52] sm:$0xff]
      %v1851 = vld [vmem:[%s1678 + $0x62] sm:$0xff]
      %v1852 = vld [vmem:[%s1678 + $0x72] sm:$0xff]
      %s1853 = scalar_lea.vmem %s4, 64
      %v1854 = vld [vmem:[%s1853] sm:$0xff]
      %v1856 = vsel %vm1166, %v1845, 0
      %v1859 = vsel %vm1166, %v1846, 0
      %v1862 = vsel %vm1166, %v1847, 0
      %v1865 = vsel %vm1166, %v1848, 0
      %v1868 = vsel %vm1166, %v1849, 0
      %v1871 = vsel %vm1166, %v1850, 0
      %v1874 = vsel %vm1166, %v1851, 0
      %v1877 = vsel %vm1166, %v1852, 0
      %1879 = vmatpush.msra.mxu0 0.0
      %1880 = vmatpush.msra.mxu0 0.0
      %1881 = vmatpush.msra.mxu0 0.0
      %1882 = vmatpush.msra.mxu0 0.0
      %1883 = vmatpush.msra.mxu0 0.0
      %1884 = vmatpush.msra.mxu0 0.0
      %1885 = vmatpush.msra.mxu0 0.0
      %1886 = vmatpush.msra.mxu0 0.0
      %1887 = vmatpush.msra.mxu0 0.0
      %1888 = vmatpush.msra.mxu0 0.0
      %1889 = vmatpush.msra.mxu0 0.0
      %1890 = vmatpush.msra.mxu0 0.0
      %1891 = vmatpush.msra.mxu0 0.0
      %1892 = vmatpush.msra.mxu0 0.0
      %1893 = vmatpush.msra.mxu0 0.0
      %1894 = vmatpush.msra.mxu0 %v1854
      %1895 = vmatmul.f32.gmra.mxu0 %v1856
      %v1896 = vpop.f32.mrf.mxu0
      %v1897 = vadd.f32 0.0, %v1896
      %1898 = vmatmul.f32.gmra.mxu0 %v1859
      %v1899 = vpop.f32.mrf.mxu0
      %v1900 = vadd.f32 0.0, %v1899
      %1901 = vmatmul.f32.gmra.mxu0 %v1862
      %v1902 = vpop.f32.mrf.mxu0
      %v1903 = vadd.f32 0.0, %v1902
      %1904 = vmatmul.f32.gmra.mxu0 %v1865
      %v1905 = vpop.f32.mrf.mxu0
      %v1906 = vadd.f32 0.0, %v1905
      %1907 = vmatmul.f32.gmra.mxu0 %v1868
      %v1908 = vpop.f32.mrf.mxu0
      %v1909 = vadd.f32 0.0, %v1908
      %1910 = vmatmul.f32.gmra.mxu0 %v1871
      %v1911 = vpop.f32.mrf.mxu0
      %v1912 = vadd.f32 0.0, %v1911
      %1913 = vmatmul.f32.gmra.mxu0 %v1874
      %v1914 = vpop.f32.mrf.mxu0
      %v1915 = vadd.f32 0.0, %v1914
      %1916 = vmatmul.f32.gmra.mxu0 %v1877
      %v1917 = vpop.f32.mrf.mxu0
      %v1918 = vadd.f32 0.0, %v1917
      %1919 = vdwg.mxu0
      %v1920 = vadd.f32 %v1837, %v1897
      %v1921 = vadd.f32 %v1838, %v1900
      %v1922 = vadd.f32 %v1839, %v1903
      %v1923 = vadd.f32 %v1840, %v1906
      %v1924 = vadd.f32 %v1841, %v1909
      %v1925 = vadd.f32 %v1842, %v1912
      %v1926 = vadd.f32 %v1843, %v1915
      %v1927 = vadd.f32 %v1844, %v1918
      %v1928 = vld [vmem:[%s5] sm:$0x1]
      %v1930 = vperm.slane %v1928, 0
      %v1932 = vmul.f32 %v1920, %v1930
      %v1933 = vmul.f32 %v1921, %v1930
      %v1934 = vmul.f32 %v1922, %v1930
      %v1935 = vmul.f32 %v1923, %v1930
      %v1936 = vmul.f32 %v1924, %v1930
      %v1937 = vmul.f32 %v1925, %v1930
      %v1938 = vmul.f32 %v1926, %v1930
      %v1939 = vmul.f32 %v1927, %v1930
      %v1940 = vld [vmem:[%s6] sm:$0x1]
      %v1942 = vperm.slane %v1940, 0
      %v1944 = vadd.f32 %v1932, %v1942
      %v1945 = vadd.f32 %v1933, %v1942
      %v1946 = vadd.f32 %v1934, %v1942
      %v1947 = vadd.f32 %v1935, %v1942
      %v1948 = vadd.f32 %v1936, %v1942
      %v1949 = vadd.f32 %v1937, %v1942
      %v1950 = vadd.f32 %v1938, %v1942
      %v1951 = vadd.f32 %v1939, %v1942
      %v1952 = vmax.f32 %v1944, 0.0
      %v1953 = vmax.f32 %v1945, 0.0
      %v1954 = vmax.f32 %v1946, 0.0
      %v1955 = vmax.f32 %v1947, 0.0
      %v1956 = vmax.f32 %v1948, 0.0
      %v1957 = vmax.f32 %v1949, 0.0
      %v1958 = vmax.f32 %v1950, 0.0
      %v1959 = vmax.f32 %v1951, 0.0
      %1960 = vst.msk [vmem:[%s278] sm:$0xff] %vm1166, %v1952
      %1961 = vst.msk [vmem:[%s278 + $0x8] sm:$0xff] %vm1166, %v1953
      %1962 = vst.msk [vmem:[%s278 + $0x10] sm:$0xff] %vm1166, %v1954
      %1963 = vst.msk [vmem:[%s278 + $0x18] sm:$0xff] %vm1166, %v1955
      %1964 = vst.msk [vmem:[%s278 + $0x20] sm:$0xff] %vm1166, %v1956
      %1965 = vst.msk [vmem:[%s278 + $0x28] sm:$0xff] %vm1166, %v1957
      %1966 = vst.msk [vmem:[%s278 + $0x30] sm:$0xff] %vm1166, %v1958
      %1967 = vst.msk [vmem:[%s278 + $0x38] sm:$0xff] %vm1166, %v1959
      %p1968 = scmp.lt.s32.totalorder %s18, 1
      %s1969 = scalar_select %p1968, %s18, 1
      %s1970 = smul.addr %s1969, 8
      %s1971 = smul.addr %s1970, 8
      %s1972 = scalar_lea.vmem %s7, %s1971
      // Predicated region
      $region49: #{down_forward.1} parent=47 // pred_check
        %p1973 = pneg %p188
      $region50: #{down_forward.1} parent=47 // pred_check_branch
        %1975 = sbr.rel (%p1973) target = $region52
      $region51: #{down_forward.1} parent=47 // pred_region
        _
      $region52: #{down_forward.1} parent=47 // pred_fallthru
        _
    $region48: #{down_forward.1} parent=5 // pred_fallthru
      _
    %p1976 = scmp.le.s32.totalorder 2, %s13
    // Predicated region
    $region53: #{down_forward.1} parent=5 // pred_check
      %p1977 = pneg %p1976
    $region54: #{down_forward.1} parent=5 // pred_check_branch
      %1979 = sbr.rel (%p1977) target = $region56
    $region55: #{down_forward.1} parent=5 // pred_region
      %s1980 = ssub.s32 %s13, 2
      // Predicated region
      $region57: #{down_forward.1} parent=55 // pred_check
        %p1981 = pneg %p194
      $region58: #{down_forward.1} parent=55 // pred_check_branch
        %1983 = sbr.rel (%p1981) target = $region60
      $region59: #{down_forward.1} parent=55 // pred_region
        %p1984 = scmp.lt.s32.totalorder %s19, 1
        %s1985 = scalar_select %p1984, %s19, 1
        %s1986 = smul.addr %s1985, 8
        %s1987 = smul.addr %s1986, 8
        %s1988 = scalar_lea.vmem %s7, %s1987
      $region60: #{down_forward.1} parent=55 // pred_fallthru
        _
    $region56: #{down_forward.1} parent=5 // pred_fallthru
      _
  $region6: #{down_forward.1} parent=0 // loop_footer
    %s17 = sadd.s32 1, %s13
  $region7: #{down_forward.1} parent=0 // loop_footer_branch
    %12 = sbr.rel target = $region3
  $region8: #{down_forward.1} parent=0 // loop_exit
    _

</llo_original>
